<compile_context>
chip_gen: v7x
topology: tpu7x:2x2x1
jax: 0.10.0
libtpu: 0.0.40
codegen_flags: <defaults>
</compile_context>

<pallas_src>
import math
import functools

import jax
import jax.numpy as jnp
from jax.experimental import pallas as pl
from jax.experimental.pallas import tpu as pltpu


def _round_up(x: int, m: int) -> int:
    return ((x + m - 1) // m) * m


# ---------------------------------------------------------------------------
# Pass 1: fused Q/K/V projection -- executed once per token-row tile.
# ---------------------------------------------------------------------------
def _qkv_projection_kernel(x_ref, wqkv_ref, bqkv_ref, q_ref, k_ref, v_ref, *,
                           num_heads: int, sub_hidden: int, hidden: int, scale: float):
    x = x_ref[...].astype(wqkv_ref.dtype)
    qkv = jnp.dot(x, wqkv_ref[...], preferred_element_type=jnp.float32) + bqkv_ref[...]
    tn = qkv.shape[0]

    def split(t):  # (tn, K) -> (H, tn, Dh)
        return jnp.transpose(t.reshape(tn, num_heads, sub_hidden), (1, 0, 2))

    # 1/sqrt(Dh) folded into Q once, here; outputs stored in the MXU dtype.
    q_ref[...] = split(qkv[:, :hidden] * scale).astype(q_ref.dtype)
    k_ref[...] = split(qkv[:, hidden:2 * hidden]).astype(k_ref.dtype)
    v_ref[...] = split(qkv[:, 2 * hidden:]).astype(v_ref.dtype)


# ---------------------------------------------------------------------------
# Pass 2: flash attention + output projection + residual LayerNorm.
# ---------------------------------------------------------------------------
def _flash_attention_layer_kernel(*refs, num_heads: int, hidden: int, has_mask: bool):
    if has_mask:
        (q_ref, k_ref, v_ref, mask_ref, x_ref, wo_ref, bo_ref,
         gamma_ref, beta_ref, out_ref, m_sc, l_sc, acc_sc) = refs
    else:
        (q_ref, k_ref, v_ref, x_ref, wo_ref, bo_ref,
         gamma_ref, beta_ref, out_ref, m_sc, l_sc, acc_sc) = refs
        mask_ref = None

    kv_i = pl.program_id(1)
    mxu_dt = wo_ref.dtype

    @pl.when(kv_i == 0)
    def _init():
        m_sc[...] = jnp.full_like(m_sc, -jnp.inf)
        l_sc[...] = jnp.zeros_like(l_sc)
        acc_sc[...] = jnp.zeros_like(acc_sc)

    # Q/K/V arrive pre-projected in (H, tile, Dh) layout and MXU dtype (no per-step
    # projection matmul, head-split transpose, or cast in this inner loop).
    s = jnp.einsum("hqd,hkd->hqk", q_ref[...], k_ref[...],
                   preferred_element_type=jnp.float32)                 # (H, tq, tk)
    if has_mask:
        # Exact masked_fill(-1e9) semantics of the PyTorch reference.
        s = jnp.where(mask_ref[...][None, :, :] == 0, jnp.float32(-1e9), s)

    # Online (flash) softmax accumulation across KV tiles.
    m_prev = m_sc[...]
    m_new = jnp.maximum(m_prev, jnp.max(s, axis=-1, keepdims=True))
    alpha = jnp.exp(m_prev - m_new)
    p = jnp.exp(s - m_new)
    l_sc[...] = alpha * l_sc[...] + jnp.sum(p, axis=-1, keepdims=True)
    acc_sc[...] = alpha * acc_sc[...] + jnp.einsum(
        "hqk,hkd->hqd", p.astype(mxu_dt), v_ref[...],
        preferred_element_type=jnp.float32)
    m_sc[...] = m_new

    @pl.when(kv_i == pl.num_programs(1) - 1)
    def _finalize():
        # EUP approx reciprocal + one Newton step: EUP slot, full f32 accuracy.
        l = l_sc[...]
        inv = pl.reciprocal(l, approx=True)
        inv = inv * (2.0 - l * inv)
        o = acc_sc[...] * inv                                          # (H, tq, Dh)
        tq = o.shape[1]
        m2 = jnp.transpose(o, (1, 0, 2)).reshape(tq, hidden)           # (tq, K)

        # SelfAttentionOutput: aggregate linear + residual + LayerNorm(eps=1e-12), f32.
        agg = jnp.dot(m2.astype(mxu_dt), wo_ref[...],
                      preferred_element_type=jnp.float32) + bo_ref[...]
        y = x_ref[...].astype(jnp.float32) + agg
        mean = jnp.mean(y, axis=-1, keepdims=True)
        var = jnp.mean((y - mean) * (y - mean), axis=-1, keepdims=True)
        xhat = (y - mean) * jax.lax.rsqrt(var + 1e-12)
        out_ref[...] = (xhat * gamma_ref[...] + beta_ref[...]).astype(out_ref.dtype)


# ---------------------------------------------------------------------------
# Parameter prep (one-time) and wrapper.
# ---------------------------------------------------------------------------
def prepare_params(params, *, weight_dtype=jnp.float32):
    """One-time parameter prep: transpose nn.Linear weights to (in, out), fuse Q/K/V into
    a single (K, 3K) matrix, reshape biases to (1, K).  Use weight_dtype=jnp.bfloat16 for
    MXU-native matmuls on v6e/v7x (softmax / LayerNorm math stays f32 in the kernel)."""
    hidden = params["wq"].shape[0]
    f32 = jnp.float32
    wqkv = jnp.concatenate([params["wq"].T, params["wk"].T, params["wv"].T], axis=1)
    bqkv = jnp.concatenate([params["bq"], params["bk"], params["bv"]])
    return {
        "wqkv": wqkv.astype(weight_dtype),
        "bqkv": bqkv.reshape(1, 3 * hidden).astype(f32),
        "wo": params["wo"].T.astype(weight_dtype),
        "bo": params["bo"].reshape(1, hidden).astype(f32),
        "gamma": params["gamma"].reshape(1, hidden).astype(f32),
        "beta": params["beta"].reshape(1, hidden).astype(f32),
    }


def _weight_spec(shape, index_map, single_buffer):
    """BlockSpec for a constant-index weight/bias stream; single-buffered when supported."""
    if single_buffer:
        try:
            return pl.BlockSpec(shape, index_map, pipeline_mode=pl.Buffered(buffer_count=1))
        except (TypeError, AttributeError):
            pass
    return pl.BlockSpec(shape, index_map)


def _try_single_buffered(run):
    """Try single-buffered constant weight streams (saves VMEM); fall back to the default
    double-buffered pipeline if this Pallas build rejects Buffered(1)."""
    try:
        return run(True)
    except Exception:
        return run(False)


def self_attention_layer(x, attn_mask, prepared, *, num_heads: int,
                         block_q: int = 256, block_kv: int = 256,
                         vmem_limit_bytes: int = 48 * 1024 * 1024):
    """x: (N, K) float32, attn_mask: (1, N, N) binary (or None), prepared: prepare_params(...).
    Returns ((N, K), None)."""
    n, hidden = x.shape
    assert hidden % num_heads == 0
    dh = hidden // num_heads
    mxu_dt = prepared["wqkv"].dtype
    scale = 1.0 / math.sqrt(dh)

    # --- tile selection & padding (never fall back to a single full-N tile) ---
    r8 = _round_up(n, 8)
    if r8 <= min(block_q, block_kv):
        tq = tk = r8
        n_pad = r8
    else:
        tq, tk = block_q, block_kv
        n_pad = _round_up(n, math.lcm(tq, tk))
    tproj = tq                                   # divides n_pad by construction

    x_p = x if n_pad == n else jnp.zeros((n_pad, hidden), x.dtype).at[:n, :].set(x)

    # Binary mask stays 1 byte/elem (int8); converted to masked_fill in-kernel.
    # Padded key columns are masked out; padded query rows are sliced off at the end.
    has_mask = (attn_mask is not None) or (n_pad != n)
    mask_i8 = None
    if has_mask:
        if attn_mask is not None:
            base = (attn_mask[0] != 0).astype(jnp.int8)
        else:
            base = jnp.ones((n, n), jnp.int8)
        mask_i8 = base if n_pad == n else (
            jnp.zeros((n_pad, n_pad), jnp.int8).at[:n, :n].set(base))

    cparams_proj = pltpu.CompilerParams(
        dimension_semantics=("parallel",), vmem_limit_bytes=vmem_limit_bytes)
    cparams_attn = pltpu.CompilerParams(
        dimension_semantics=("parallel", "arbitrary"),
        vmem_limit_bytes=vmem_limit_bytes)

    # --- pass 1: Q/K/V projection, once per token (no per-(qi,ki) recomputation) ---
    def run_projection(single_buffer):
        return pl.pallas_call(
            functools.partial(_qkv_projection_kernel, num_heads=num_heads,
                              sub_hidden=dh, hidden=hidden, scale=scale),
            out_shape=(jax.ShapeDtypeStruct((num_heads, n_pad, dh), mxu_dt),) * 3,
            grid=(n_pad // tproj,),
            in_specs=[
                pl.BlockSpec((tproj, hidden), lambda i: (i, 0)),                 # x rows
                _weight_spec((hidden, 3 * hidden), lambda i: (0, 0), single_buffer),  # wqkv
                _weight_spec((1, 3 * hidden), lambda i: (0, 0), single_buffer),       # bqkv
            ],
            out_specs=[pl.BlockSpec((num_heads, tproj, dh), lambda i: (0, i, 0))] * 3,
            compiler_params=cparams_proj,
        )(x_p, prepared["wqkv"], prepared["bqkv"])

    q_hnd, k_hnd, v_hnd = _try_single_buffered(run_projection)

    # --- pass 2: flash attention + output projection + residual LayerNorm ---
    def run_attention(single_buffer):
        in_specs = [
            pl.BlockSpec((num_heads, tq, dh), lambda qi, ki: (0, qi, 0)),   # Q (scaled)
            pl.BlockSpec((num_heads, tk, dh), lambda qi, ki: (0, ki, 0)),   # K
            pl.BlockSpec((num_heads, tk, dh), lambda qi, ki: (0, ki, 0)),   # V
        ]
        operands = [q_hnd, k_hnd, v_hnd]
        if has_mask:
            in_specs.append(pl.BlockSpec((tq, tk), lambda qi, ki: (qi, ki)))  # int8 mask
            operands.append(mask_i8)
        in_specs += [
            pl.BlockSpec((tq, hidden), lambda qi, ki: (qi, 0)),             # residual x
            _weight_spec((hidden, hidden), lambda qi, ki: (0, 0), single_buffer),  # wo
            _weight_spec((1, hidden), lambda qi, ki: (0, 0), single_buffer),       # bo
            _weight_spec((1, hidden), lambda qi, ki: (0, 0), single_buffer),       # gamma
            _weight_spec((1, hidden), lambda qi, ki: (0, 0), single_buffer),       # beta
        ]
        operands += [x_p, prepared["wo"], prepared["bo"],
                     prepared["gamma"], prepared["beta"]]
        return pl.pallas_call(
            functools.partial(_flash_attention_layer_kernel, num_heads=num_heads,
                              hidden=hidden, has_mask=has_mask),
            out_shape=jax.ShapeDtypeStruct((n_pad, hidden), x.dtype),
            grid=(n_pad // tq, n_pad // tk),
            in_specs=in_specs,
            out_specs=pl.BlockSpec((tq, hidden), lambda qi, ki: (qi, 0)),
            scratch_shapes=[
                pltpu.VMEM((num_heads, tq, 1), jnp.float32),     # running max
                pltpu.VMEM((num_heads, tq, 1), jnp.float32),     # running denom
                pltpu.VMEM((num_heads, tq, dh), jnp.float32),    # output accumulator
            ],
            compiler_params=cparams_attn,
        )(*operands)

    out = _try_single_buffered(run_attention)
    if n_pad != n:
        out = out[:n]

    # return_weights=False (module default) -> attn_data is None
    # TODO(synk): return_weights=True (materializing the full (H, N, N) softmax) not emitted.
    return out, None


# ---------------------------------------------------------------------------
# Pure-JAX reference & self-test.
# ---------------------------------------------------------------------------
def _reference_jax(x, attn_mask, params, *, num_heads: int):
    """Pure-JAX reference mirroring the PyTorch forward (eval mode)."""
    n, hidden = x.shape
    dh = hidden // num_heads
    q = x @ params["wq"].T + params["bq"]
    k = x @ params["wk"].T + params["bk"]
    v = x @ params["wv"].T + params["bv"]

    def split(t):  # (N, K) -> (H, N, Dh)
        return jnp.transpose(t.reshape(n, num_heads, dh), (1, 0, 2))

    qr, kr, vr = split(q), split(k), split(v)
    w = jnp.einsum("hnd,hmd->hnm", qr, kr) / math.sqrt(dh)
    if attn_mask is not None:
        w = jnp.where(attn_mask == 0, -1e9, w)
    w = jax.nn.softmax(w, axis=-1)
    m = jnp.einsum("hnm,hmd->hnd", w, vr)
    m = jnp.transpose(m, (1, 0, 2)).reshape(n, hidden)
    agg = m @ params["wo"].T + params["bo"]
    y = x + agg
    mean = jnp.mean(y, axis=-1, keepdims=True)
    var = jnp.mean((y - mean) ** 2, axis=-1, keepdims=True)
    return (y - mean) / jnp.sqrt(var + 1e-12) * params["gamma"] + params["beta"]


if __name__ == "__main__":
    N, HIDDEN, HEADS = 16, 128, 4   # lane-dense hidden (=128) -> unmasked vector stores

    key = jax.random.PRNGKey(0)
    keys = jax.random.split(key, 10)
    s = 1.0 / math.sqrt(HIDDEN)
    params = {
        "wq": jax.random.uniform(keys[0], (HIDDEN, HIDDEN), jnp.float32, -s, s),
        "bq": jax.random.uniform(keys[1], (HIDDEN,), jnp.float32, -s, s),
        "wk": jax.random.uniform(keys[2], (HIDDEN, HIDDEN), jnp.float32, -s, s),
        "bk": jax.random.uniform(keys[3], (HIDDEN,), jnp.float32, -s, s),
        "wv": jax.random.uniform(keys[4], (HIDDEN, HIDDEN), jnp.float32, -s, s),
        "bv": jax.random.uniform(keys[5], (HIDDEN,), jnp.float32, -s, s),
        "wo": jax.random.uniform(keys[6], (HIDDEN, HIDDEN), jnp.float32, -s, s),
        "bo": jax.random.uniform(keys[7], (HIDDEN,), jnp.float32, -s, s),
        "gamma": jnp.ones((HIDDEN,), jnp.float32),
        "beta": jnp.zeros((HIDDEN,), jnp.float32),
    }

    x = jax.random.normal(keys[8], (N, HIDDEN), jnp.float32)
    # Binary attention mask (1, N, N): lower-triangular to exercise the masked_fill path.
    attn_mask = jnp.tril(jnp.ones((N, N), jnp.float32))[None, :, :]

    # 1) f32 weight path (exact), masked.
    prepared_f32 = prepare_params(params)   # one-time transpose + Q/K/V fusion
    out, attn_data = self_attention_layer(x, attn_mask, prepared_f32, num_heads=HEADS)
    out = jax.block_until_ready(out)
    ref = _reference_jax(x, attn_mask, params, num_heads=HEADS)
    assert out.shape == (N, HIDDEN)
    assert jnp.allclose(out, ref, atol=2e-4, rtol=2e-4), "f32 mismatch vs JAX reference"
    assert attn_data is None  # return_weights=False default

    # 2) No-mask path (mask input elided entirely).
    out_nm, _ = self_attention_layer(x, None, prepared_f32, num_heads=HEADS)
    ref_nm = _reference_jax(x, None, params, num_heads=HEADS)
    assert jnp.allclose(jax.block_until_ready(out_nm), ref_nm, atol=2e-4, rtol=2e-4), \
        "no-mask mismatch vs JAX reference"

    # 3) Padding path: N not a multiple of 8 -> padded keys masked, padded queries sliced off.
    N2 = 20
    x2 = jax.random.normal(keys[9], (N2, HIDDEN), jnp.float32)
    mask2 = jnp.tril(jnp.ones((N2, N2), jnp.float32))[None, :, :]
    out2, _ = self_attention_layer(x2, mask2, prepared_f32, num_heads=HEADS)
    ref2 = _reference_jax(x2, mask2, params, num_heads=HEADS)
    assert out2.shape == (N2, HIDDEN)
    assert jnp.allclose(jax.block_until_ready(out2), ref2, atol=2e-4, rtol=2e-4), \
        "padded-N mismatch vs JAX reference"

    # 4) bf16 production weight path (MXU-native matmuls; softmax/LayerNorm stay f32).
    prepared_bf16 = prepare_params(params, weight_dtype=jnp.bfloat16)
    out_bf, _ = self_attention_layer(x, attn_mask, prepared_bf16, num_heads=HEADS)
    assert jnp.allclose(jax.block_until_ready(out_bf), ref, atol=1e-1, rtol=1e-1), \
        "bf16 mismatch vs JAX reference"

    print("KERNEL_OK")
</pallas_src>

<mosaic_0001>
module attributes {stable_mosaic.version = 11 : i64} {
  func.func @_qkv_projection_kernel(%arg0: i32, %arg1: memref<16x128xf32, #tpu.memory_space<vmem>>, %arg2: memref<128x384xf32, #tpu.memory_space<vmem>>, %arg3: memref<1x384xf32, #tpu.memory_space<vmem>>, %arg4: memref<4x16x32xf32, #tpu.memory_space<vmem>>, %arg5: memref<4x16x32xf32, #tpu.memory_space<vmem>>, %arg6: memref<4x16x32xf32, #tpu.memory_space<vmem>>) attributes {dimension_semantics = [#tpu.dimension_semantics<parallel>], iteration_bounds = array<i64: 1>, scalar_prefetch = 0 : i64, scratch_operands = 0 : i64, tpu.core_type = #tpu.core_type<tc>, window_params = [{transform_indices = @transform_0, window_bounds = array<i64: 16, 128>}, {pipeline_mode = #tpu.pipeline_mode<synchronous>, transform_indices = @transform_1, window_bounds = array<i64: 128, 384>}, {pipeline_mode = #tpu.pipeline_mode<synchronous>, transform_indices = @transform_2, window_bounds = array<i64: 1, 384>}, {transform_indices = @transform_3, window_bounds = array<i64: 4, 16, 32>}, {transform_indices = @transform_4, window_bounds = array<i64: 4, 16, 32>}, {transform_indices = @transform_5, window_bounds = array<i64: 4, 16, 32>}]} {
    %c0 = arith.constant 0 : index
    %c0_0 = arith.constant 0 : index
    %0 = vector.load %arg1[%c0, %c0_0] : memref<16x128xf32, #tpu.memory_space<vmem>>, vector<16x128xf32>
    %c0_1 = arith.constant 0 : index
    %c0_2 = arith.constant 0 : index
    %1 = vector.load %arg2[%c0_1, %c0_2] : memref<128x384xf32, #tpu.memory_space<vmem>>, vector<128x384xf32>
    %cst = arith.constant dense<0.000000e+00> : vector<16x384xf32>
    %2 = tpu.matmul %0, %1, %cst {dimension_numbers = #tpu.dot_dimension_numbers<[1], [0], [0], [1], [0, 0, 1, 1], [], []>} : vector<16x128xf32>, vector<128x384xf32>, vector<16x384xf32> -> vector<16x384xf32>
    %c0_3 = arith.constant 0 : index
    %c0_4 = arith.constant 0 : index
    %3 = vector.load %arg3[%c0_3, %c0_4] : memref<1x384xf32, #tpu.memory_space<vmem>>, vector<1x384xf32>
    %4 = vector.broadcast %3 : vector<1x384xf32> to vector<16x384xf32>
    %5 = arith.addf %2, %4 : vector<16x384xf32>
    %6 = vector.extract_strided_slice %5 {offsets = [0, 0], sizes = [16, 128], strides = [1, 1]} : vector<16x384xf32> to vector<16x128xf32>
    %cst_5 = arith.constant 0.176776692 : f32
    %7 = vector.broadcast %cst_5 : f32 to vector<16x128xf32>
    %8 = arith.mulf %6, %7 : vector<16x128xf32>
    %9 = vector.shape_cast %8 : vector<16x128xf32> to vector<16x4x32xf32>
    %10 = tpu.transpose %9, [1, 0, 2] : vector<16x4x32xf32> -> vector<4x16x32xf32>
    %c0_6 = arith.constant 0 : index
    %c0_7 = arith.constant 0 : index
    %c0_8 = arith.constant 0 : index
    %11 = vector.load %arg4[%c0_6, %c0_7, %c0_8] : memref<4x16x32xf32, #tpu.memory_space<vmem>>, vector<4x16x32xf32>
    tpu.vector_store %arg4[%c0_6, %c0_7, %c0_8], %10 {strides = array<i32>} : memref<4x16x32xf32, #tpu.memory_space<vmem>>, vector<4x16x32xf32>,
    %12 = vector.extract_strided_slice %5 {offsets = [0, 128], sizes = [16, 128], strides = [1, 1]} : vector<16x384xf32> to vector<16x128xf32>
    %13 = vector.shape_cast %12 : vector<16x128xf32> to vector<16x4x32xf32>
    %14 = tpu.transpose %13, [1, 0, 2] : vector<16x4x32xf32> -> vector<4x16x32xf32>
    %c0_9 = arith.constant 0 : index
    %c0_10 = arith.constant 0 : index
    %c0_11 = arith.constant 0 : index
    %15 = vector.load %arg5[%c0_9, %c0_10, %c0_11] : memref<4x16x32xf32, #tpu.memory_space<vmem>>, vector<4x16x32xf32>
    tpu.vector_store %arg5[%c0_9, %c0_10, %c0_11], %14 {strides = array<i32>} : memref<4x16x32xf32, #tpu.memory_space<vmem>>, vector<4x16x32xf32>,
    %16 = vector.extract_strided_slice %5 {offsets = [0, 256], sizes = [16, 128], strides = [1, 1]} : vector<16x384xf32> to vector<16x128xf32>
    %17 = vector.shape_cast %16 : vector<16x128xf32> to vector<16x4x32xf32>
    %18 = tpu.transpose %17, [1, 0, 2] : vector<16x4x32xf32> -> vector<4x16x32xf32>
    %c0_12 = arith.constant 0 : index
    %c0_13 = arith.constant 0 : index
    %c0_14 = arith.constant 0 : index
    %19 = vector.load %arg6[%c0_12, %c0_13, %c0_14] : memref<4x16x32xf32, #tpu.memory_space<vmem>>, vector<4x16x32xf32>
    tpu.vector_store %arg6[%c0_12, %c0_13, %c0_14], %18 {strides = array<i32>} : memref<4x16x32xf32, #tpu.memory_space<vmem>>, vector<4x16x32xf32>,
    return
  }
  func.func @transform_0(%arg0: i32) -> (i32, i32) {
    %c0_i32 = arith.constant 0 : i32
    %c0_i32_0 = arith.constant 0 : i32
    return %arg0, %c0_i32 : i32, i32
  }
  func.func @transform_1(%arg0: i32) -> (i32, i32) {
    %c0_i32 = arith.constant 0 : i32
    %c0_i32_0 = arith.constant 0 : i32
    %c0_i32_1 = arith.constant 0 : i32
    return %c0_i32, %c0_i32_0 : i32, i32
  }
  func.func @transform_2(%arg0: i32) -> (i32, i32) {
    %c0_i32 = arith.constant 0 : i32
    %c0_i32_0 = arith.constant 0 : i32
    %c0_i32_1 = arith.constant 0 : i32
    return %c0_i32, %c0_i32_0 : i32, i32
  }
  func.func @transform_3(%arg0: i32) -> (i32, i32, i32) {
    %c0_i32 = arith.constant 0 : i32
    %c0_i32_0 = arith.constant 0 : i32
    %c0_i32_1 = arith.constant 0 : i32
    return %c0_i32, %arg0, %c0_i32_0 : i32, i32, i32
  }
  func.func @transform_4(%arg0: i32) -> (i32, i32, i32) {
    %c0_i32 = arith.constant 0 : i32
    %c0_i32_0 = arith.constant 0 : i32
    %c0_i32_1 = arith.constant 0 : i32
    return %c0_i32, %arg0, %c0_i32_0 : i32, i32, i32
  }
  func.func @transform_5(%arg0: i32) -> (i32, i32, i32) {
    %c0_i32 = arith.constant 0 : i32
    %c0_i32_0 = arith.constant 0 : i32
    %c0_i32_1 = arith.constant 0 : i32
    return %c0_i32, %arg0, %c0_i32_0 : i32, i32, i32
  }
}

module attributes {stable_mosaic.version = 11 : i64} {
  func.func @_qkv_projection_kernel(%arg0: i32, %arg1: memref<16x128xf32, #tpu.memory_space<vmem>>, %arg2: memref<128x384xf32, #tpu.memory_space<vmem>>, %arg3: memref<1x384xf32, #tpu.memory_space<vmem>>, %arg4: memref<4x16x32xf32, #tpu.memory_space<vmem>>, %arg5: memref<4x16x32xf32, #tpu.memory_space<vmem>>, %arg6: memref<4x16x32xf32, #tpu.memory_space<vmem>>) attributes {dimension_semantics = [#tpu.dimension_semantics<parallel>], iteration_bounds = array<i64: 1>, scalar_prefetch = 0 : i64, scratch_operands = 0 : i64, tpu.core_type = #tpu.core_type<tc>, window_params = [{transform_indices = @transform_0, window_bounds = array<i64: 16, 128>}, {pipeline_mode = #tpu.pipeline_mode<synchronous>, transform_indices = @transform_1, window_bounds = array<i64: 128, 384>}, {pipeline_mode = #tpu.pipeline_mode<synchronous>, transform_indices = @transform_2, window_bounds = array<i64: 1, 384>}, {transform_indices = @transform_3, window_bounds = array<i64: 4, 16, 32>}, {transform_indices = @transform_4, window_bounds = array<i64: 4, 16, 32>}, {transform_indices = @transform_5, window_bounds = array<i64: 4, 16, 32>}]} {
    %c0 = arith.constant 0 : index
    %c0_0 = arith.constant 0 : index
    %0 = vector.load %arg1[%c0, %c0_0] : memref<16x128xf32, #tpu.memory_space<vmem>>, vector<16x128xf32>
    %c0_1 = arith.constant 0 : index
    %c0_2 = arith.constant 0 : index
    %1 = vector.load %arg2[%c0_1, %c0_2] : memref<128x384xf32, #tpu.memory_space<vmem>>, vector<128x384xf32>
    %cst = arith.constant dense<0.000000e+00> : vector<16x384xf32>
    %2 = tpu.matmul %0, %1, %cst {dimension_numbers = #tpu.dot_dimension_numbers<[1], [0], [0], [1], [0, 0, 1, 1], [], []>} : vector<16x128xf32>, vector<128x384xf32>, vector<16x384xf32> -> vector<16x384xf32>
    %c0_3 = arith.constant 0 : index
    %c0_4 = arith.constant 0 : index
    %3 = vector.load %arg3[%c0_3, %c0_4] : memref<1x384xf32, #tpu.memory_space<vmem>>, vector<1x384xf32>
    %4 = vector.broadcast %3 : vector<1x384xf32> to vector<16x384xf32>
    %5 = arith.addf %2, %4 : vector<16x384xf32>
    %6 = vector.extract_strided_slice %5 {offsets = [0, 0], sizes = [16, 128], strides = [1, 1]} : vector<16x384xf32> to vector<16x128xf32>
    %cst_5 = arith.constant 0.176776692 : f32
    %7 = vector.broadcast %cst_5 : f32 to vector<16x128xf32>
    %8 = arith.mulf %6, %7 : vector<16x128xf32>
    %9 = vector.shape_cast %8 : vector<16x128xf32> to vector<16x4x32xf32>
    %10 = tpu.transpose %9, [1, 0, 2] : vector<16x4x32xf32> -> vector<4x16x32xf32>
    %c0_6 = arith.constant 0 : index
    %c0_7 = arith.constant 0 : index
    %c0_8 = arith.constant 0 : index
    %11 = vector.load %arg4[%c0_6, %c0_7, %c0_8] : memref<4x16x32xf32, #tpu.memory_space<vmem>>, vector<4x16x32xf32>
    tpu.vector_store %arg4[%c0_6, %c0_7, %c0_8], %10 {strides = array<i32>} : memref<4x16x32xf32, #tpu.memory_space<vmem>>, vector<4x16x32xf32>,
    %12 = vector.extract_strided_slice %5 {offsets = [0, 128], sizes = [16, 128], strides = [1, 1]} : vector<16x384xf32> to vector<16x128xf32>
    %13 = vector.shape_cast %12 : vector<16x128xf32> to vector<16x4x32xf32>
    %14 = tpu.transpose %13, [1, 0, 2] : vector<16x4x32xf32> -> vector<4x16x32xf32>
    %c0_9 = arith.constant 0 : index
    %c0_10 = arith.constant 0 : index
    %c0_11 = arith.constant 0 : index
    %15 = vector.load %arg5[%c0_9, %c0_10, %c0_11] : memref<4x16x32xf32, #tpu.memory_space<vmem>>, vector<4x16x32xf32>
    tpu.vector_store %arg5[%c0_9, %c0_10, %c0_11], %14 {strides = array<i32>} : memref<4x16x32xf32, #tpu.memory_space<vmem>>, vector<4x16x32xf32>,
    %16 = vector.extract_strided_slice %5 {offsets = [0, 256], sizes = [16, 128], strides = [1, 1]} : vector<16x384xf32> to vector<16x128xf32>
    %17 = vector.shape_cast %16 : vector<16x128xf32> to vector<16x4x32xf32>
    %18 = tpu.transpose %17, [1, 0, 2] : vector<16x4x32xf32> -> vector<4x16x32xf32>
    %c0_12 = arith.constant 0 : index
    %c0_13 = arith.constant 0 : index
    %c0_14 = arith.constant 0 : index
    %19 = vector.load %arg6[%c0_12, %c0_13, %c0_14] : memref<4x16x32xf32, #tpu.memory_space<vmem>>, vector<4x16x32xf32>
    tpu.vector_store %arg6[%c0_12, %c0_13, %c0_14], %18 {strides = array<i32>} : memref<4x16x32xf32, #tpu.memory_space<vmem>>, vector<4x16x32xf32>,
    return
  }
  func.func @transform_0(%arg0: i32) -> (i32, i32) {
    %c0_i32 = arith.constant 0 : i32
    %c0_i32_0 = arith.constant 0 : i32
    return %arg0, %c0_i32 : i32, i32
  }
  func.func @transform_1(%arg0: i32) -> (i32, i32) {
    %c0_i32 = arith.constant 0 : i32
    %c0_i32_0 = arith.constant 0 : i32
    %c0_i32_1 = arith.constant 0 : i32
    return %c0_i32, %c0_i32_0 : i32, i32
  }
  func.func @transform_2(%arg0: i32) -> (i32, i32) {
    %c0_i32 = arith.constant 0 : i32
    %c0_i32_0 = arith.constant 0 : i32
    %c0_i32_1 = arith.constant 0 : i32
    return %c0_i32, %c0_i32_0 : i32, i32
  }
  func.func @transform_3(%arg0: i32) -> (i32, i32, i32) {
    %c0_i32 = arith.constant 0 : i32
    %c0_i32_0 = arith.constant 0 : i32
    %c0_i32_1 = arith.constant 0 : i32
    return %c0_i32, %arg0, %c0_i32_0 : i32, i32, i32
  }
  func.func @transform_4(%arg0: i32) -> (i32, i32, i32) {
    %c0_i32 = arith.constant 0 : i32
    %c0_i32_0 = arith.constant 0 : i32
    %c0_i32_1 = arith.constant 0 : i32
    return %c0_i32, %arg0, %c0_i32_0 : i32, i32, i32
  }
  func.func @transform_5(%arg0: i32) -> (i32, i32, i32) {
    %c0_i32 = arith.constant 0 : i32
    %c0_i32_0 = arith.constant 0 : i32
    %c0_i32_1 = arith.constant 0 : i32
    return %c0_i32, %arg0, %c0_i32_0 : i32, i32, i32
  }
}

</mosaic_0001>

<llo_original>
// kernel: tpu_custom_call.1
$region0: #{tpu_custom_call.1}
  #allocation0 [shape = 'u32[]', space=smem, size = 0x4, offset = 0x4, fixed_abs, tag = 'smem constant byte address 0x4 - core index']
  #allocation1 [shape = 'u32[144,128]{1,0:T(1,128)}', space=vmem, size = 0x12000, scoped, tag = 'internal scratch']
  %s0 = inlined_call_operand.hbm [shape: f32[16,128], index: 0, kind: input, shape index: {}]
  %s1 = inlined_call_operand.hbm [shape: f32[128,384], index: 1, kind: input, shape index: {}]
  %s2 = inlined_call_operand.vmem [shape: f32[1,384], index: 2, kind: input, shape index: {}]
  %s3 = inlined_call_operand.hbm [shape: f32[4,16,32], index: 3, kind: output, shape index: {0}]
  %s4 = inlined_call_operand.hbm [shape: f32[4,16,32], index: 4, kind: output, shape index: {1}]
  %s5 = inlined_call_operand.hbm [shape: f32[4,16,32], index: 5, kind: output, shape index: {2}]
  %6 = xla_tuple %s3, %s4, %s5
  %s7 = sld [smem:[#allocation0]]
  $region46: #{tpu_custom_call.1} parent=0
    _
  %s9 = ssub.s32 1, %s7
  %s10 = scalar_select 0, %s9, %s7
  $region1: #{tpu_custom_call.1} parent=0
    #allocation2 [shape = 'u8[8192]{0}', space=vmem, size = 0x2000, scoped, tag = 'input window, operand 0, single buffered']
    #allocation3 [shape = 's32[1]{0}', space=sflag, size = 0x4, scoped, tag = 'scoped memory for tpu_custom_call.1']
    #allocation4 [shape = 's32[1]{0}', space=sflag, size = 0x4, scoped, tag = 'scoped memory for tpu_custom_call.1']
    #allocation5 [shape = 'u8[196608]{0}', space=vmem, size = 0x30000, scoped, tag = 'input window, operand 1, single buffered']
    #allocation6 [shape = 's32[1]{0}', space=sflag, size = 0x4, scoped, tag = 'scoped memory for tpu_custom_call.1']
    #allocation7 [shape = 'u8[32768]{0}', space=vmem, size = 0x8000, scoped, tag = 'output window, operand 0, single buffered']
    #allocation8 [shape = 'u8[32768]{0}', space=vmem, size = 0x8000, scoped, tag = 'output window, operand 1, single buffered']
    #allocation9 [shape = 's32[1]{0}', space=sflag, size = 0x4, scoped, tag = 'scoped memory for tpu_custom_call.1']
    #allocation10 [shape = 'u8[32768]{0}', space=vmem, size = 0x8000, scoped, tag = 'output window, operand 2, single buffered']
    %11 = vsyncpa [#allocation3], 0
    %12 = vsyncpa [#allocation6], 0
    %13 = vsyncpa [#allocation4], 0
    %14 = vsyncpa [#allocation9], 0
    // Predicated region
    $region2: #{tpu_custom_call.1} parent=1 // pred_check
      _
    $region3: #{tpu_custom_call.1} parent=1 // pred_check_branch
      %16 = sbr.rel (0) target = $region5
    $region4: #{tpu_custom_call.1} parent=1 // pred_region
      %s18 = ssub.s32 256, 256
      %19 = vsyncadd [#allocation3], %s18
      %s20 = sshll.u32 [#allocation2], 4
      %s21 = int_to_ptr.vmem [resolvable:$true] %s20
      %26 = dma.hbm_to_vmem [thread:$0]  %s0, 256, %s21, [#allocation3], 128, 128, 8
    $region5: #{tpu_custom_call.1} parent=1 // pred_fallthru
      _
    // Predicated region
    $region6: #{tpu_custom_call.1} parent=1 // pred_check
      _
    $region7: #{tpu_custom_call.1} parent=1 // pred_check_branch
      %28 = sbr.rel (0) target = $region9
    $region8: #{tpu_custom_call.1} parent=1 // pred_region
      %s30 = ssub.s32 6144, 6144
      %31 = vsyncadd [#allocation6], %s30
      %s32 = sshll.u32 [#allocation5], 4
      %s33 = int_to_ptr.vmem [resolvable:$true] %s32
      %38 = dma.hbm_to_vmem [thread:$0]  %s1, 6144, %s33, [#allocation6], 384, 384, 24
    $region9: #{tpu_custom_call.1} parent=1 // pred_fallthru
      _
    // Predicated region
    $region10: #{tpu_custom_call.1} parent=1 // pred_check
      _
    $region11: #{tpu_custom_call.1} parent=1 // pred_check_branch
      %40 = sbr.rel (0) target = $region13
    $region12: #{tpu_custom_call.1} parent=1 // pred_region
      _
    $region13: #{tpu_custom_call.1} parent=1 // pred_fallthru
      _
    // Predicated region
    $region14: #{tpu_custom_call.1} parent=1 // pred_check
      _
    $region15: #{tpu_custom_call.1} parent=1 // pred_check_branch
      %42 = sbr.rel (0) target = $region17
    $region16: #{tpu_custom_call.1} parent=1 // pred_region
      %43 = dma.done [#allocation3], 256
    $region17: #{tpu_custom_call.1} parent=1 // pred_fallthru
      _
    // Predicated region
    $region18: #{tpu_custom_call.1} parent=1 // pred_check
      _
    $region19: #{tpu_custom_call.1} parent=1 // pred_check_branch
      %45 = sbr.rel (0) target = $region21
    $region20: #{tpu_custom_call.1} parent=1 // pred_region
      %46 = dma.done [#allocation6], 6144
    $region21: #{tpu_custom_call.1} parent=1 // pred_fallthru
      _
    %v47 = vld [vmem:[#allocation2] sm:$0xff]
    %v48 = vld [vmem:[#allocation2 + $0x8] sm:$0xff]
    %v49 = vld [vmem:[#allocation5] sm:$0xff]
    %v50 = vld [vmem:[#allocation5 + $0x8] sm:$0xff]
    %v51 = vld [vmem:[#allocation5 + $0x10] sm:$0xff]
    %v52 = vld [vmem:[#allocation5 + $0x18] sm:$0xff]
    %v53 = vld [vmem:[#allocation5 + $0x20] sm:$0xff]
    %v54 = vld [vmem:[#allocation5 + $0x28] sm:$0xff]
    %v55 = vld [vmem:[#allocation5 + $0x30] sm:$0xff]
    %v56 = vld [vmem:[#allocation5 + $0x38] sm:$0xff]
    %v57 = vld [vmem:[#allocation5 + $0x40] sm:$0xff]
    %v58 = vld [vmem:[#allocation5 + $0x48] sm:$0xff]
    %v59 = vld [vmem:[#allocation5 + $0x50] sm:$0xff]
    %v60 = vld [vmem:[#allocation5 + $0x58] sm:$0xff]
    %v61 = vld [vmem:[#allocation5 + $0x60] sm:$0xff]
    %v62 = vld [vmem:[#allocation5 + $0x68] sm:$0xff]
    %v63 = vld [vmem:[#allocation5 + $0x70] sm:$0xff]
    %v64 = vld [vmem:[#allocation5 + $0x78] sm:$0xff]
    %v65 = vld [vmem:[#allocation5 + $0x80] sm:$0xff]
    %v66 = vld [vmem:[#allocation5 + $0x88] sm:$0xff]
    %v67 = vld [vmem:[#allocation5 + $0x90] sm:$0xff]
    %v68 = vld [vmem:[#allocation5 + $0x98] sm:$0xff]
    %v69 = vld [vmem:[#allocation5 + $0xa0] sm:$0xff]
    %v70 = vld [vmem:[#allocation5 + $0xa8] sm:$0xff]
    %v71 = vld [vmem:[#allocation5 + $0xb0] sm:$0xff]
    %v72 = vld [vmem:[#allocation5 + $0xb8] sm:$0xff]
    %v73 = vld [vmem:[#allocation5 + $0xc0] sm:$0xff]
    %v74 = vld [vmem:[#allocation5 + $0xc8] sm:$0xff]
    %v75 = vld [vmem:[#allocation5 + $0xd0] sm:$0xff]
    %v76 = vld [vmem:[#allocation5 + $0xd8] sm:$0xff]
    %v77 = vld [vmem:[#allocation5 + $0xe0] sm:$0xff]
    %v78 = vld [vmem:[#allocation5 + $0xe8] sm:$0xff]
    %v79 = vld [vmem:[#allocation5 + $0xf0] sm:$0xff]
    %v80 = vld [vmem:[#allocation5 + $0xf8] sm:$0xff]
    %v81 = vld [vmem:[#allocation5 + $0x100] sm:$0xff]
    %v82 = vld [vmem:[#allocation5 + $0x108] sm:$0xff]
    %v83 = vld [vmem:[#allocation5 + $0x110] sm:$0xff]
    %v84 = vld [vmem:[#allocation5 + $0x118] sm:$0xff]
    %v85 = vld [vmem:[#allocation5 + $0x120] sm:$0xff]
    %v86 = vld [vmem:[#allocation5 + $0x128] sm:$0xff]
    %v87 = vld [vmem:[#allocation5 + $0x130] sm:$0xff]
    %v88 = vld [vmem:[#allocation5 + $0x138] sm:$0xff]
    %v89 = vld [vmem:[#allocation5 + $0x140] sm:$0xff]
    %v90 = vld [vmem:[#allocation5 + $0x148] sm:$0xff]
    %v91 = vld [vmem:[#allocation5 + $0x150] sm:$0xff]
    %v92 = vld [vmem:[#allocation5 + $0x158] sm:$0xff]
    %v93 = vld [vmem:[#allocation5 + $0x160] sm:$0xff]
    %v94 = vld [vmem:[#allocation5 + $0x168] sm:$0xff]
    %v95 = vld [vmem:[#allocation5 + $0x170] sm:$0xff]
    %v96 = vld [vmem:[#allocation5 + $0x178] sm:$0xff]
    %v97 = vld [vmem:[%s2] sm:$0x7]
    %v99 = vlaneseq
    %v100 = vshrl.u32 %v99, 7
    %v101 = vsub.s32 0, %v100
    %v102 = vrot.slane %v97, %v101
    %v103 = vlaneseq
    %v104 = vshrl.u32 %v103, 7
    %v105 = vsub.s32 1, %v104
    %v106 = vrot.slane %v97, %v105
    %v107 = vlaneseq
    %v108 = vshrl.u32 %v107, 7
    %v109 = vsub.s32 2, %v108
    %v110 = vrot.slane %v97, %v109
    %114 = vmatprep.subr.mxu0 %v50
    %115 = vmatpush1.msra.mxu0 %v49
    %116 = vmatprep.subr.mxu0 %v53
    %117 = vmatpush1.msra.mxu0 %v52
    %118 = vmatprep.subr.mxu0 %v56
    %119 = vmatpush1.msra.mxu0 %v55
    %120 = vmatprep.subr.mxu0 %v59
    %121 = vmatpush1.msra.mxu0 %v58
    %122 = vmatprep.subr.mxu0 %v62
    %123 = vmatpush1.msra.mxu0 %v61
    %124 = vmatprep.subr.mxu0 %v65
    %125 = vmatpush1.msra.mxu0 %v64
    %126 = vmatprep.subr.mxu0 %v68
    %127 = vmatpush1.msra.mxu0 %v67
    %128 = vmatprep.subr.mxu0 %v71
    %129 = vmatpush1.msra.mxu0 %v70
    %130 = vmatprep.subr.mxu0 %v74
    %131 = vmatpush1.msra.mxu0 %v73
    %132 = vmatprep.subr.mxu0 %v77
    %133 = vmatpush1.msra.mxu0 %v76
    %134 = vmatprep.subr.mxu0 %v80
    %135 = vmatpush1.msra.mxu0 %v79
    %136 = vmatprep.subr.mxu0 %v83
    %137 = vmatpush1.msra.mxu0 %v82
    %138 = vmatprep.subr.mxu0 %v86
    %139 = vmatpush1.msra.mxu0 %v85
    %140 = vmatprep.subr.mxu0 %v89
    %141 = vmatpush1.msra.mxu0 %v88
    %142 = vmatprep.subr.mxu0 %v92
    %143 = vmatpush1.msra.mxu0 %v91
    %144 = vmatprep.subr.mxu0 %v95
    %145 = vmatpush1.msra.mxu0 %v94
    %146 = vmatprep.subr.mxu0 0.0
    %147 = vmatpush1.msra.mxu0 0.0
    %148 = vmatprep.subr.mxu0 0.0
    %149 = vmatpush1.msra.mxu0 0.0
    %150 = vmatprep.subr.mxu0 0.0
    %151 = vmatpush1.msra.mxu0 0.0
    %152 = vmatprep.subr.mxu0 0.0
    %153 = vmatpush1.msra.mxu0 0.0
    %154 = vmatprep.subr.mxu0 0.0
    %155 = vmatpush1.msra.mxu0 0.0
    %156 = vmatprep.subr.mxu0 0.0
    %157 = vmatpush1.msra.mxu0 0.0
    %158 = vmatprep.subr.mxu0 0.0
    %159 = vmatpush1.msra.mxu0 0.0
    %160 = vmatprep.subr.mxu0 0.0
    %161 = vmatpush1.msra.mxu0 0.0
    %162 = vmatprep.subr.mxu0 0.0
    %163 = vmatpush1.msra.mxu0 0.0
    %164 = vmatprep.subr.mxu0 0.0
    %165 = vmatpush1.msra.mxu0 0.0
    %166 = vmatprep.subr.mxu0 0.0
    %167 = vmatpush1.msra.mxu0 0.0
    %168 = vmatprep.subr.mxu0 0.0
    %169 = vmatpush1.msra.mxu0 0.0
    %170 = vmatprep.subr.mxu0 0.0
    %171 = vmatpush1.msra.mxu0 0.0
    %172 = vmatprep.subr.mxu0 0.0
    %173 = vmatpush1.msra.mxu0 0.0
    %174 = vmatprep.subr.mxu0 0.0
    %175 = vmatpush1.msra.mxu0 0.0
    %176 = vmatprep.subr.mxu0 0.0
    %177 = vmatpush1.msra.mxu0 0.0
    %178 = vmatprep.mubr.f32.mxu0 0.0
    %179 = vmatmul.mubr.f32.gmra.mrb[0].mxu0 %v47
    %v180 = vpop.f32.mrb[0].mxu0
    %v181 = vadd.f32 %v102, %v180
    %v182 = vpop.f32.mrb[0].mxu0
    %v183 = vadd.f32 %v106, %v182
    %184 = vmatprep.mubr.f32.mxu0 0.0
    %185 = vmatmul.mubr.f32.gmra.mrb[0].mxu0 %v48
    %v186 = vpop.f32.mrb[0].mxu0
    %v187 = vadd.f32 %v102, %v186
    %v188 = vpop.f32.mrb[0].mxu0
    %v189 = vadd.f32 %v106, %v188
    %190 = vdwg.mxu0
    %191 = vmatprep.subr.mxu0 0.0
    %192 = vmatpush1.msra.mxu0 %v51
    %193 = vmatprep.subr.mxu0 0.0
    %194 = vmatpush1.msra.mxu0 %v54
    %195 = vmatprep.subr.mxu0 0.0
    %196 = vmatpush1.msra.mxu0 %v57
    %197 = vmatprep.subr.mxu0 0.0
    %198 = vmatpush1.msra.mxu0 %v60
    %199 = vmatprep.subr.mxu0 0.0
    %200 = vmatpush1.msra.mxu0 %v63
    %201 = vmatprep.subr.mxu0 0.0
    %202 = vmatpush1.msra.mxu0 %v66
    %203 = vmatprep.subr.mxu0 0.0
    %204 = vmatpush1.msra.mxu0 %v69
    %205 = vmatprep.subr.mxu0 0.0
    %206 = vmatpush1.msra.mxu0 %v72
    %207 = vmatprep.subr.mxu0 0.0
    %208 = vmatpush1.msra.mxu0 %v75
    %209 = vmatprep.subr.mxu0 0.0
    %210 = vmatpush1.msra.mxu0 %v78
    %211 = vmatprep.subr.mxu0 0.0
    %212 = vmatpush1.msra.mxu0 %v81
    %213 = vmatprep.subr.mxu0 0.0
    %214 = vmatpush1.msra.mxu0 %v84
    %215 = vmatprep.subr.mxu0 0.0
    %216 = vmatpush1.msra.mxu0 %v87
    %217 = vmatprep.subr.mxu0 0.0
    %218 = vmatpush1.msra.mxu0 %v90
    %219 = vmatprep.subr.mxu0 0.0
    %220 = vmatpush1.msra.mxu0 %v93
    %221 = vmatprep.subr.mxu0 0.0
    %222 = vmatpush1.msra.mxu0 %v96
    %223 = vmatprep.subr.mxu0 0.0
    %224 = vmatpush1.msra.mxu0 0.0
    %225 = vmatprep.subr.mxu0 0.0
    %226 = vmatpush1.msra.mxu0 0.0
    %227 = vmatprep.subr.mxu0 0.0
    %228 = vmatpush1.msra.mxu0 0.0
    %229 = vmatprep.subr.mxu0 0.0
    %230 = vmatpush1.msra.mxu0 0.0
    %231 = vmatprep.subr.mxu0 0.0
    %232 = vmatpush1.msra.mxu0 0.0
    %233 = vmatprep.subr.mxu0 0.0
    %234 = vmatpush1.msra.mxu0 0.0
    %235 = vmatprep.subr.mxu0 0.0
    %236 = vmatpush1.msra.mxu0 0.0
    %237 = vmatprep.subr.mxu0 0.0
    %238 = vmatpush1.msra.mxu0 0.0
    %239 = vmatprep.subr.mxu0 0.0
    %240 = vmatpush1.msra.mxu0 0.0
    %241 = vmatprep.subr.mxu0 0.0
    %242 = vmatpush1.msra.mxu0 0.0
    %243 = vmatprep.subr.mxu0 0.0
    %244 = vmatpush1.msra.mxu0 0.0
    %245 = vmatprep.subr.mxu0 0.0
    %246 = vmatpush1.msra.mxu0 0.0
    %247 = vmatprep.subr.mxu0 0.0
    %248 = vmatpush1.msra.mxu0 0.0
    %249 = vmatprep.subr.mxu0 0.0
    %250 = vmatpush1.msra.mxu0 0.0
    %251 = vmatprep.subr.mxu0 0.0
    %252 = vmatpush1.msra.mxu0 0.0
    %253 = vmatprep.subr.mxu0 0.0
    %254 = vmatpush1.msra.mxu0 0.0
    %255 = vmatprep.mubr.f32.mxu0 0.0
    %256 = vmatmul.mubr.f32.gmra.mrb[0].mxu0 %v47
    %v257 = vpop.f32.mrb[0].mxu0
    %v258 = vadd.f32 %v110, %v257
    %v259 = vpop.f32.mrb[0].mxu0
    %260 = vmatprep.mubr.f32.mxu0 0.0
    %261 = vmatmul.mubr.f32.gmra.mrb[0].mxu0 %v48
    %v262 = vpop.f32.mrb[0].mxu0
    %v263 = vadd.f32 %v110, %v262
    %v264 = vpop.f32.mrb[0].mxu0
    %265 = vdwg.mxu0
    %v266 = vmul.f32 %v181, 0.17677669
    %v267 = vmul.f32 %v187, 0.17677669
    %270 = vrot.lane.b32.xlu0 %v266, 96
    %v271 = vpop.permute.xlu0 %270
    %272 = vrot.lane.b32.xlu0 %v267, 96
    %v273 = vpop.permute.xlu0 %272
    %276 = vrot.lane.b32.xlu0 %v266, 64
    %v277 = vpop.permute.xlu0 %276
    %278 = vrot.lane.b32.xlu0 %v267, 64
    %v279 = vpop.permute.xlu0 %278
    %282 = vrot.lane.b32.xlu0 %v266, 32
    %v283 = vpop.permute.xlu0 %282
    %284 = vrot.lane.b32.xlu0 %v267, 32
    %v285 = vpop.permute.xlu0 %284
    %v288 = vcombine.low %v266, %v277
    %v289 = vcombine.high %v266, %v277
    %v291 = vunpack.c.l.s4 1983009808
    %v292 = vunpack.c.0.s8 %v291
    %v293 = vlaneseq
    %v294 = vshrl.u32 %v293, 7
    %v295 = vsub.s32 %v292, %v294
    %v296 = vrot.slane %v288, %v295
    %v298 = vunpack.c.l.s4 1983009808
    %v299 = vunpack.c.0.s8 %v298
    %v300 = vlaneseq
    %v301 = vshrl.u32 %v300, 7
    %v302 = vsub.s32 %v299, %v301
    %v303 = vrot.slane %v289, %v302
    %v304 = vcombine.low %v271, %v283
    %v305 = vcombine.high %v271, %v283
    %v307 = vunpack.c.l.s4 1983009808
    %v308 = vunpack.c.0.s8 %v307
    %v309 = vlaneseq
    %v310 = vshrl.u32 %v309, 7
    %v311 = vsub.s32 %v308, %v310
    %v312 = vrot.slane %v304, %v311
    %v314 = vunpack.c.l.s4 1983009808
    %v315 = vunpack.c.0.s8 %v314
    %v316 = vlaneseq
    %v317 = vshrl.u32 %v316, 7
    %v318 = vsub.s32 %v315, %v317
    %v319 = vrot.slane %v305, %v318
    %v320 = vcombine.low %v296, %v312
    %v321 = vcombine.high %v296, %v312
    %v323 = vunpack.c.l.s4 1934713408
    %v324 = vunpack.c.0.s8 %v323
    %v325 = vlaneseq
    %v326 = vshrl.u32 %v325, 7
    %v327 = vsub.s32 %v324, %v326
    %v328 = vrot.slane %v320, %v327
    %v330 = vunpack.c.l.s4 1934713408
    %v331 = vunpack.c.0.s8 %v330
    %v332 = vlaneseq
    %v333 = vshrl.u32 %v332, 7
    %v334 = vsub.s32 %v331, %v333
    %v335 = vrot.slane %v321, %v334
    %v336 = vcombine.low %v303, %v319
    %v337 = vcombine.high %v303, %v319
    %v339 = vunpack.c.l.s4 1934713408
    %v340 = vunpack.c.0.s8 %v339
    %v341 = vlaneseq
    %v342 = vshrl.u32 %v341, 7
    %v343 = vsub.s32 %v340, %v342
    %v344 = vrot.slane %v336, %v343
    %v346 = vunpack.c.l.s4 1934713408
    %v347 = vunpack.c.0.s8 %v346
    %v348 = vlaneseq
    %v349 = vshrl.u32 %v348, 7
    %v350 = vsub.s32 %v347, %v349
    %v351 = vrot.slane %v337, %v350
    %v352 = vcombine.high %v328, 0.0
    %v353 = vcombine.high %v335, 0.0
    %v354 = vcombine.high %v344, 0.0
    %v355 = vcombine.high %v351, 0.0
    %v356 = vcombine.low %v267, %v279
    %v357 = vcombine.high %v267, %v279
    %v359 = vunpack.c.l.s4 1983009808
    %v360 = vunpack.c.0.s8 %v359
    %v361 = vlaneseq
    %v362 = vshrl.u32 %v361, 7
    %v363 = vsub.s32 %v360, %v362
    %v364 = vrot.slane %v356, %v363
    %v366 = vunpack.c.l.s4 1983009808
    %v367 = vunpack.c.0.s8 %v366
    %v368 = vlaneseq
    %v369 = vshrl.u32 %v368, 7
    %v370 = vsub.s32 %v367, %v369
    %v371 = vrot.slane %v357, %v370
    %v372 = vcombine.low %v273, %v285
    %v373 = vcombine.high %v273, %v285
    %v375 = vunpack.c.l.s4 1983009808
    %v376 = vunpack.c.0.s8 %v375
    %v377 = vlaneseq
    %v378 = vshrl.u32 %v377, 7
    %v379 = vsub.s32 %v376, %v378
    %v380 = vrot.slane %v372, %v379
    %v382 = vunpack.c.l.s4 1983009808
    %v383 = vunpack.c.0.s8 %v382
    %v384 = vlaneseq
    %v385 = vshrl.u32 %v384, 7
    %v386 = vsub.s32 %v383, %v385
    %v387 = vrot.slane %v373, %v386
    %v388 = vcombine.low %v364, %v380
    %v389 = vcombine.high %v364, %v380
    %v391 = vunpack.c.l.s4 1934713408
    %v392 = vunpack.c.0.s8 %v391
    %v393 = vlaneseq
    %v394 = vshrl.u32 %v393, 7
    %v395 = vsub.s32 %v392, %v394
    %v396 = vrot.slane %v388, %v395
    %v398 = vunpack.c.l.s4 1934713408
    %v399 = vunpack.c.0.s8 %v398
    %v400 = vlaneseq
    %v401 = vshrl.u32 %v400, 7
    %v402 = vsub.s32 %v399, %v401
    %v403 = vrot.slane %v389, %v402
    %v404 = vcombine.low %v371, %v387
    %v405 = vcombine.high %v371, %v387
    %v407 = vunpack.c.l.s4 1934713408
    %v408 = vunpack.c.0.s8 %v407
    %v409 = vlaneseq
    %v410 = vshrl.u32 %v409, 7
    %v411 = vsub.s32 %v408, %v410
    %v412 = vrot.slane %v404, %v411
    %v414 = vunpack.c.l.s4 1934713408
    %v415 = vunpack.c.0.s8 %v414
    %v416 = vlaneseq
    %v417 = vshrl.u32 %v416, 7
    %v418 = vsub.s32 %v415, %v417
    %v419 = vrot.slane %v405, %v418
    %v420 = vcombine.high %v396, 0.0
    %v421 = vcombine.high %v403, 0.0
    %v422 = vcombine.high %v412, 0.0
    %v423 = vcombine.high %v419, 0.0
    %v424 = vcombine.low %v328, %v335
    %v426 = vunpack.c.l.s4 1983009808
    %v427 = vunpack.c.0.s8 %v426
    %v428 = vlaneseq
    %v429 = vshrl.u32 %v428, 7
    %v430 = vsub.s32 %v427, %v429
    %v431 = vrot.slane %v424, %v430
    %v432 = vcombine.low %v352, %v353
    %v434 = vunpack.c.l.s4 1983009808
    %v435 = vunpack.c.0.s8 %v434
    %v436 = vlaneseq
    %v437 = vshrl.u32 %v436, 7
    %v438 = vsub.s32 %v435, %v437
    %v439 = vrot.slane %v432, %v438
    %v440 = vcombine.low %v344, %v351
    %v442 = vunpack.c.l.s4 1983009808
    %v443 = vunpack.c.0.s8 %v442
    %v444 = vlaneseq
    %v445 = vshrl.u32 %v444, 7
    %v446 = vsub.s32 %v443, %v445
    %v447 = vrot.slane %v440, %v446
    %v448 = vcombine.low %v354, %v355
    %v450 = vunpack.c.l.s4 1983009808
    %v451 = vunpack.c.0.s8 %v450
    %v452 = vlaneseq
    %v453 = vshrl.u32 %v452, 7
    %v454 = vsub.s32 %v451, %v453
    %v455 = vrot.slane %v448, %v454
    %v456 = vcombine.low %v431, %v439
    %v457 = vcombine.high %v431, %v439
    %v459 = vunpack.c.l.s4 1934713408
    %v460 = vunpack.c.0.s8 %v459
    %v461 = vlaneseq
    %v462 = vshrl.u32 %v461, 7
    %v463 = vsub.s32 %v460, %v462
    %v464 = vrot.slane %v456, %v463
    %v466 = vunpack.c.l.s4 1934713408
    %v467 = vunpack.c.0.s8 %v466
    %v468 = vlaneseq
    %v469 = vshrl.u32 %v468, 7
    %v470 = vsub.s32 %v467, %v469
    %v471 = vrot.slane %v457, %v470
    %v472 = vcombine.low %v447, %v455
    %v473 = vcombine.high %v447, %v455
    %v475 = vunpack.c.l.s4 1934713408
    %v476 = vunpack.c.0.s8 %v475
    %v477 = vlaneseq
    %v478 = vshrl.u32 %v477, 7
    %v479 = vsub.s32 %v476, %v478
    %v480 = vrot.slane %v472, %v479
    %v482 = vunpack.c.l.s4 1934713408
    %v483 = vunpack.c.0.s8 %v482
    %v484 = vlaneseq
    %v485 = vshrl.u32 %v484, 7
    %v486 = vsub.s32 %v483, %v485
    %v487 = vrot.slane %v473, %v486
    %v488 = vcombine.low %v464, %v480
    %v489 = vcombine.high %v464, %v480
    %v490 = vcombine.low %v471, %v487
    %v491 = vcombine.high %v471, %v487
    %v492 = vcombine.low %v396, %v403
    %v494 = vunpack.c.l.s4 1983009808
    %v495 = vunpack.c.0.s8 %v494
    %v496 = vlaneseq
    %v497 = vshrl.u32 %v496, 7
    %v498 = vsub.s32 %v495, %v497
    %v499 = vrot.slane %v492, %v498
    %v500 = vcombine.low %v420, %v421
    %v502 = vunpack.c.l.s4 1983009808
    %v503 = vunpack.c.0.s8 %v502
    %v504 = vlaneseq
    %v505 = vshrl.u32 %v504, 7
    %v506 = vsub.s32 %v503, %v505
    %v507 = vrot.slane %v500, %v506
    %v508 = vcombine.low %v412, %v419
    %v510 = vunpack.c.l.s4 1983009808
    %v511 = vunpack.c.0.s8 %v510
    %v512 = vlaneseq
    %v513 = vshrl.u32 %v512, 7
    %v514 = vsub.s32 %v511, %v513
    %v515 = vrot.slane %v508, %v514
    %v516 = vcombine.low %v422, %v423
    %v518 = vunpack.c.l.s4 1983009808
    %v519 = vunpack.c.0.s8 %v518
    %v520 = vlaneseq
    %v521 = vshrl.u32 %v520, 7
    %v522 = vsub.s32 %v519, %v521
    %v523 = vrot.slane %v516, %v522
    %v524 = vcombine.low %v499, %v507
    %v525 = vcombine.high %v499, %v507
    %v527 = vunpack.c.l.s4 1934713408
    %v528 = vunpack.c.0.s8 %v527
    %v529 = vlaneseq
    %v530 = vshrl.u32 %v529, 7
    %v531 = vsub.s32 %v528, %v530
    %v532 = vrot.slane %v524, %v531
    %v534 = vunpack.c.l.s4 1934713408
    %v535 = vunpack.c.0.s8 %v534
    %v536 = vlaneseq
    %v537 = vshrl.u32 %v536, 7
    %v538 = vsub.s32 %v535, %v537
    %v539 = vrot.slane %v525, %v538
    %v540 = vcombine.low %v515, %v523
    %v541 = vcombine.high %v515, %v523
    %v543 = vunpack.c.l.s4 1934713408
    %v544 = vunpack.c.0.s8 %v543
    %v545 = vlaneseq
    %v546 = vshrl.u32 %v545, 7
    %v547 = vsub.s32 %v544, %v546
    %v548 = vrot.slane %v540, %v547
    %v550 = vunpack.c.l.s4 1934713408
    %v551 = vunpack.c.0.s8 %v550
    %v552 = vlaneseq
    %v553 = vshrl.u32 %v552, 7
    %v554 = vsub.s32 %v551, %v553
    %v555 = vrot.slane %v541, %v554
    %v556 = vcombine.low %v532, %v548
    %v557 = vcombine.high %v532, %v548
    %v558 = vcombine.low %v539, %v555
    %v559 = vcombine.high %v539, %v555
    %vm560 = vcmask 261120
    %561 = vst.msk [vmem:[#allocation7] sm:$0xff] %vm560, %v488
    %562 = vst.msk [vmem:[#allocation7 + $0x8] sm:$0xff] %vm560, %v556
    %563 = vst.msk [vmem:[#allocation7 + $0x10] sm:$0xff] %vm560, %v489
    %564 = vst.msk [vmem:[#allocation7 + $0x18] sm:$0xff] %vm560, %v557
    %565 = vst.msk [vmem:[#allocation7 + $0x20] sm:$0xff] %vm560, %v490
    %566 = vst.msk [vmem:[#allocation7 + $0x28] sm:$0xff] %vm560, %v558
    %567 = vst.msk [vmem:[#allocation7 + $0x30] sm:$0xff] %vm560, %v491
    %568 = vst.msk [vmem:[#allocation7 + $0x38] sm:$0xff] %vm560, %v559
    %571 = vrot.lane.b32.xlu0 %v183, 96
    %v572 = vpop.permute.xlu0 %571
    %573 = vrot.lane.b32.xlu0 %v189, 96
    %v574 = vpop.permute.xlu0 %573
    %577 = vrot.lane.b32.xlu0 %v183, 64
    %v578 = vpop.permute.xlu0 %577
    %579 = vrot.lane.b32.xlu0 %v189, 64
    %v580 = vpop.permute.xlu0 %579
    %583 = vrot.lane.b32.xlu0 %v183, 32
    %v584 = vpop.permute.xlu0 %583
    %585 = vrot.lane.b32.xlu0 %v189, 32
    %v586 = vpop.permute.xlu0 %585
    %v589 = vcombine.low %v183, %v578
    %v590 = vcombine.high %v183, %v578
    %v592 = vunpack.c.l.s4 1983009808
    %v593 = vunpack.c.0.s8 %v592
    %v594 = vlaneseq
    %v595 = vshrl.u32 %v594, 7
    %v596 = vsub.s32 %v593, %v595
    %v597 = vrot.slane %v589, %v596
    %v599 = vunpack.c.l.s4 1983009808
    %v600 = vunpack.c.0.s8 %v599
    %v601 = vlaneseq
    %v602 = vshrl.u32 %v601, 7
    %v603 = vsub.s32 %v600, %v602
    %v604 = vrot.slane %v590, %v603
    %v605 = vcombine.low %v572, %v584
    %v606 = vcombine.high %v572, %v584
    %v608 = vunpack.c.l.s4 1983009808
    %v609 = vunpack.c.0.s8 %v608
    %v610 = vlaneseq
    %v611 = vshrl.u32 %v610, 7
    %v612 = vsub.s32 %v609, %v611
    %v613 = vrot.slane %v605, %v612
    %v615 = vunpack.c.l.s4 1983009808
    %v616 = vunpack.c.0.s8 %v615
    %v617 = vlaneseq
    %v618 = vshrl.u32 %v617, 7
    %v619 = vsub.s32 %v616, %v618
    %v620 = vrot.slane %v606, %v619
    %v621 = vcombine.low %v597, %v613
    %v622 = vcombine.high %v597, %v613
    %v624 = vunpack.c.l.s4 1934713408
    %v625 = vunpack.c.0.s8 %v624
    %v626 = vlaneseq
    %v627 = vshrl.u32 %v626, 7
    %v628 = vsub.s32 %v625, %v627
    %v629 = vrot.slane %v621, %v628
    %v631 = vunpack.c.l.s4 1934713408
    %v632 = vunpack.c.0.s8 %v631
    %v633 = vlaneseq
    %v634 = vshrl.u32 %v633, 7
    %v635 = vsub.s32 %v632, %v634
    %v636 = vrot.slane %v622, %v635
    %v637 = vcombine.low %v604, %v620
    %v638 = vcombine.high %v604, %v620
    %v640 = vunpack.c.l.s4 1934713408
    %v641 = vunpack.c.0.s8 %v640
    %v642 = vlaneseq
    %v643 = vshrl.u32 %v642, 7
    %v644 = vsub.s32 %v641, %v643
    %v645 = vrot.slane %v637, %v644
    %v647 = vunpack.c.l.s4 1934713408
    %v648 = vunpack.c.0.s8 %v647
    %v649 = vlaneseq
    %v650 = vshrl.u32 %v649, 7
    %v651 = vsub.s32 %v648, %v650
    %v652 = vrot.slane %v638, %v651
    %v653 = vcombine.high %v629, 0.0
    %v654 = vcombine.high %v636, 0.0
    %v655 = vcombine.high %v645, 0.0
    %v656 = vcombine.high %v652, 0.0
    %v657 = vcombine.low %v189, %v580
    %v658 = vcombine.high %v189, %v580
    %v660 = vunpack.c.l.s4 1983009808
    %v661 = vunpack.c.0.s8 %v660
    %v662 = vlaneseq
    %v663 = vshrl.u32 %v662, 7
    %v664 = vsub.s32 %v661, %v663
    %v665 = vrot.slane %v657, %v664
    %v667 = vunpack.c.l.s4 1983009808
    %v668 = vunpack.c.0.s8 %v667
    %v669 = vlaneseq
    %v670 = vshrl.u32 %v669, 7
    %v671 = vsub.s32 %v668, %v670
    %v672 = vrot.slane %v658, %v671
    %v673 = vcombine.low %v574, %v586
    %v674 = vcombine.high %v574, %v586
    %v676 = vunpack.c.l.s4 1983009808
    %v677 = vunpack.c.0.s8 %v676
    %v678 = vlaneseq
    %v679 = vshrl.u32 %v678, 7
    %v680 = vsub.s32 %v677, %v679
    %v681 = vrot.slane %v673, %v680
    %v683 = vunpack.c.l.s4 1983009808
    %v684 = vunpack.c.0.s8 %v683
    %v685 = vlaneseq
    %v686 = vshrl.u32 %v685, 7
    %v687 = vsub.s32 %v684, %v686
    %v688 = vrot.slane %v674, %v687
    %v689 = vcombine.low %v665, %v681
    %v690 = vcombine.high %v665, %v681
    %v692 = vunpack.c.l.s4 1934713408
    %v693 = vunpack.c.0.s8 %v692
    %v694 = vlaneseq
    %v695 = vshrl.u32 %v694, 7
    %v696 = vsub.s32 %v693, %v695
    %v697 = vrot.slane %v689, %v696
    %v699 = vunpack.c.l.s4 1934713408
    %v700 = vunpack.c.0.s8 %v699
    %v701 = vlaneseq
    %v702 = vshrl.u32 %v701, 7
    %v703 = vsub.s32 %v700, %v702
    %v704 = vrot.slane %v690, %v703
    %v705 = vcombine.low %v672, %v688
    %v706 = vcombine.high %v672, %v688
    %v708 = vunpack.c.l.s4 1934713408
    %v709 = vunpack.c.0.s8 %v708
    %v710 = vlaneseq
    %v711 = vshrl.u32 %v710, 7
    %v712 = vsub.s32 %v709, %v711
    %v713 = vrot.slane %v705, %v712
    %v715 = vunpack.c.l.s4 1934713408
    %v716 = vunpack.c.0.s8 %v715
    %v717 = vlaneseq
    %v718 = vshrl.u32 %v717, 7
    %v719 = vsub.s32 %v716, %v718
    %v720 = vrot.slane %v706, %v719
    %v721 = vcombine.high %v697, 0.0
    %v722 = vcombine.high %v704, 0.0
    %v723 = vcombine.high %v713, 0.0
    %v724 = vcombine.high %v720, 0.0
    %v725 = vcombine.low %v629, %v636
    %v727 = vunpack.c.l.s4 1983009808
    %v728 = vunpack.c.0.s8 %v727
    %v729 = vlaneseq
    %v730 = vshrl.u32 %v729, 7
    %v731 = vsub.s32 %v728, %v730
    %v732 = vrot.slane %v725, %v731
    %v733 = vcombine.low %v653, %v654
    %v735 = vunpack.c.l.s4 1983009808
    %v736 = vunpack.c.0.s8 %v735
    %v737 = vlaneseq
    %v738 = vshrl.u32 %v737, 7
    %v739 = vsub.s32 %v736, %v738
    %v740 = vrot.slane %v733, %v739
    %v741 = vcombine.low %v645, %v652
    %v743 = vunpack.c.l.s4 1983009808
    %v744 = vunpack.c.0.s8 %v743
    %v745 = vlaneseq
    %v746 = vshrl.u32 %v745, 7
    %v747 = vsub.s32 %v744, %v746
    %v748 = vrot.slane %v741, %v747
    %v749 = vcombine.low %v655, %v656
    %v751 = vunpack.c.l.s4 1983009808
    %v752 = vunpack.c.0.s8 %v751
    %v753 = vlaneseq
    %v754 = vshrl.u32 %v753, 7
    %v755 = vsub.s32 %v752, %v754
    %v756 = vrot.slane %v749, %v755
    %v757 = vcombine.low %v732, %v740
    %v758 = vcombine.high %v732, %v740
    %v760 = vunpack.c.l.s4 1934713408
    %v761 = vunpack.c.0.s8 %v760
    %v762 = vlaneseq
    %v763 = vshrl.u32 %v762, 7
    %v764 = vsub.s32 %v761, %v763
    %v765 = vrot.slane %v757, %v764
    %v767 = vunpack.c.l.s4 1934713408
    %v768 = vunpack.c.0.s8 %v767
    %v769 = vlaneseq
    %v770 = vshrl.u32 %v769, 7
    %v771 = vsub.s32 %v768, %v770
    %v772 = vrot.slane %v758, %v771
    %v773 = vcombine.low %v748, %v756
    %v774 = vcombine.high %v748, %v756
    %v776 = vunpack.c.l.s4 1934713408
    %v777 = vunpack.c.0.s8 %v776
    %v778 = vlaneseq
    %v779 = vshrl.u32 %v778, 7
    %v780 = vsub.s32 %v777, %v779
    %v781 = vrot.slane %v773, %v780
    %v783 = vunpack.c.l.s4 1934713408
    %v784 = vunpack.c.0.s8 %v783
    %v785 = vlaneseq
    %v786 = vshrl.u32 %v785, 7
    %v787 = vsub.s32 %v784, %v786
    %v788 = vrot.slane %v774, %v787
    %v789 = vcombine.low %v765, %v781
    %v790 = vcombine.high %v765, %v781
    %v791 = vcombine.low %v772, %v788
    %v792 = vcombine.high %v772, %v788
    %v793 = vcombine.low %v697, %v704
    %v795 = vunpack.c.l.s4 1983009808
    %v796 = vunpack.c.0.s8 %v795
    %v797 = vlaneseq
    %v798 = vshrl.u32 %v797, 7
    %v799 = vsub.s32 %v796, %v798
    %v800 = vrot.slane %v793, %v799
    %v801 = vcombine.low %v721, %v722
    %v803 = vunpack.c.l.s4 1983009808
    %v804 = vunpack.c.0.s8 %v803
    %v805 = vlaneseq
    %v806 = vshrl.u32 %v805, 7
    %v807 = vsub.s32 %v804, %v806
    %v808 = vrot.slane %v801, %v807
    %v809 = vcombine.low %v713, %v720
    %v811 = vunpack.c.l.s4 1983009808
    %v812 = vunpack.c.0.s8 %v811
    %v813 = vlaneseq
    %v814 = vshrl.u32 %v813, 7
    %v815 = vsub.s32 %v812, %v814
    %v816 = vrot.slane %v809, %v815
    %v817 = vcombine.low %v723, %v724
    %v819 = vunpack.c.l.s4 1983009808
    %v820 = vunpack.c.0.s8 %v819
    %v821 = vlaneseq
    %v822 = vshrl.u32 %v821, 7
    %v823 = vsub.s32 %v820, %v822
    %v824 = vrot.slane %v817, %v823
    %v825 = vcombine.low %v800, %v808
    %v826 = vcombine.high %v800, %v808
    %v828 = vunpack.c.l.s4 1934713408
    %v829 = vunpack.c.0.s8 %v828
    %v830 = vlaneseq
    %v831 = vshrl.u32 %v830, 7
    %v832 = vsub.s32 %v829, %v831
    %v833 = vrot.slane %v825, %v832
    %v835 = vunpack.c.l.s4 1934713408
    %v836 = vunpack.c.0.s8 %v835
    %v837 = vlaneseq
    %v838 = vshrl.u32 %v837, 7
    %v839 = vsub.s32 %v836, %v838
    %v840 = vrot.slane %v826, %v839
    %v841 = vcombine.low %v816, %v824
    %v842 = vcombine.high %v816, %v824
    %v844 = vunpack.c.l.s4 1934713408
    %v845 = vunpack.c.0.s8 %v844
    %v846 = vlaneseq
    %v847 = vshrl.u32 %v846, 7
    %v848 = vsub.s32 %v845, %v847
    %v849 = vrot.slane %v841, %v848
    %v851 = vunpack.c.l.s4 1934713408
    %v852 = vunpack.c.0.s8 %v851
    %v853 = vlaneseq
    %v854 = vshrl.u32 %v853, 7
    %v855 = vsub.s32 %v852, %v854
    %v856 = vrot.slane %v842, %v855
    %v857 = vcombine.low %v833, %v849
    %v858 = vcombine.high %v833, %v849
    %v859 = vcombine.low %v840, %v856
    %v860 = vcombine.high %v840, %v856
    %861 = vst.msk [vmem:[#allocation8] sm:$0xff] %vm560, %v789
    %862 = vst.msk [vmem:[#allocation8 + $0x8] sm:$0xff] %vm560, %v857
    %863 = vst.msk [vmem:[#allocation8 + $0x10] sm:$0xff] %vm560, %v790
    %864 = vst.msk [vmem:[#allocation8 + $0x18] sm:$0xff] %vm560, %v858
    %865 = vst.msk [vmem:[#allocation8 + $0x20] sm:$0xff] %vm560, %v791
    %866 = vst.msk [vmem:[#allocation8 + $0x28] sm:$0xff] %vm560, %v859
    %867 = vst.msk [vmem:[#allocation8 + $0x30] sm:$0xff] %vm560, %v792
    %868 = vst.msk [vmem:[#allocation8 + $0x38] sm:$0xff] %vm560, %v860
    %871 = vrot.lane.b32.xlu0 %v258, 96
    %v872 = vpop.permute.xlu0 %871
    %873 = vrot.lane.b32.xlu0 %v263, 96
    %v874 = vpop.permute.xlu0 %873
    %877 = vrot.lane.b32.xlu0 %v258, 64
    %v878 = vpop.permute.xlu0 %877
    %879 = vrot.lane.b32.xlu0 %v263, 64
    %v880 = vpop.permute.xlu0 %879
    %883 = vrot.lane.b32.xlu0 %v258, 32
    %v884 = vpop.permute.xlu0 %883
    %885 = vrot.lane.b32.xlu0 %v263, 32
    %v886 = vpop.permute.xlu0 %885
    %v889 = vcombine.low %v258, %v878
    %v890 = vcombine.high %v258, %v878
    %v892 = vunpack.c.l.s4 1983009808
    %v893 = vunpack.c.0.s8 %v892
    %v894 = vlaneseq
    %v895 = vshrl.u32 %v894, 7
    %v896 = vsub.s32 %v893, %v895
    %v897 = vrot.slane %v889, %v896
    %v899 = vunpack.c.l.s4 1983009808
    %v900 = vunpack.c.0.s8 %v899
    %v901 = vlaneseq
    %v902 = vshrl.u32 %v901, 7
    %v903 = vsub.s32 %v900, %v902
    %v904 = vrot.slane %v890, %v903
    %v905 = vcombine.low %v872, %v884
    %v906 = vcombine.high %v872, %v884
    %v908 = vunpack.c.l.s4 1983009808
    %v909 = vunpack.c.0.s8 %v908
    %v910 = vlaneseq
    %v911 = vshrl.u32 %v910, 7
    %v912 = vsub.s32 %v909, %v911
    %v913 = vrot.slane %v905, %v912
    %v915 = vunpack.c.l.s4 1983009808
    %v916 = vunpack.c.0.s8 %v915
    %v917 = vlaneseq
    %v918 = vshrl.u32 %v917, 7
    %v919 = vsub.s32 %v916, %v918
    %v920 = vrot.slane %v906, %v919
    %v921 = vcombine.low %v897, %v913
    %v922 = vcombine.high %v897, %v913
    %v924 = vunpack.c.l.s4 1934713408
    %v925 = vunpack.c.0.s8 %v924
    %v926 = vlaneseq
    %v927 = vshrl.u32 %v926, 7
    %v928 = vsub.s32 %v925, %v927
    %v929 = vrot.slane %v921, %v928
    %v931 = vunpack.c.l.s4 1934713408
    %v932 = vunpack.c.0.s8 %v931
    %v933 = vlaneseq
    %v934 = vshrl.u32 %v933, 7
    %v935 = vsub.s32 %v932, %v934
    %v936 = vrot.slane %v922, %v935
    %v937 = vcombine.low %v904, %v920
    %v938 = vcombine.high %v904, %v920
    %v940 = vunpack.c.l.s4 1934713408
    %v941 = vunpack.c.0.s8 %v940
    %v942 = vlaneseq
    %v943 = vshrl.u32 %v942, 7
    %v944 = vsub.s32 %v941, %v943
    %v945 = vrot.slane %v937, %v944
    %v947 = vunpack.c.l.s4 1934713408
    %v948 = vunpack.c.0.s8 %v947
    %v949 = vlaneseq
    %v950 = vshrl.u32 %v949, 7
    %v951 = vsub.s32 %v948, %v950
    %v952 = vrot.slane %v938, %v951
    %v953 = vcombine.high %v929, 0.0
    %v954 = vcombine.high %v936, 0.0
    %v955 = vcombine.high %v945, 0.0
    %v956 = vcombine.high %v952, 0.0
    %v957 = vcombine.low %v263, %v880
    %v958 = vcombine.high %v263, %v880
    %v960 = vunpack.c.l.s4 1983009808
    %v961 = vunpack.c.0.s8 %v960
    %v962 = vlaneseq
    %v963 = vshrl.u32 %v962, 7
    %v964 = vsub.s32 %v961, %v963
    %v965 = vrot.slane %v957, %v964
    %v967 = vunpack.c.l.s4 1983009808
    %v968 = vunpack.c.0.s8 %v967
    %v969 = vlaneseq
    %v970 = vshrl.u32 %v969, 7
    %v971 = vsub.s32 %v968, %v970
    %v972 = vrot.slane %v958, %v971
    %v973 = vcombine.low %v874, %v886
    %v974 = vcombine.high %v874, %v886
    %v976 = vunpack.c.l.s4 1983009808
    %v977 = vunpack.c.0.s8 %v976
    %v978 = vlaneseq
    %v979 = vshrl.u32 %v978, 7
    %v980 = vsub.s32 %v977, %v979
    %v981 = vrot.slane %v973, %v980
    %v983 = vunpack.c.l.s4 1983009808
    %v984 = vunpack.c.0.s8 %v983
    %v985 = vlaneseq
    %v986 = vshrl.u32 %v985, 7
    %v987 = vsub.s32 %v984, %v986
    %v988 = vrot.slane %v974, %v987
    %v989 = vcombine.low %v965, %v981
    %v990 = vcombine.high %v965, %v981
    %v992 = vunpack.c.l.s4 1934713408
    %v993 = vunpack.c.0.s8 %v992
    %v994 = vlaneseq
    %v995 = vshrl.u32 %v994, 7
    %v996 = vsub.s32 %v993, %v995
    %v997 = vrot.slane %v989, %v996
    %v999 = vunpack.c.l.s4 1934713408
    %v1000 = vunpack.c.0.s8 %v999
    %v1001 = vlaneseq
    %v1002 = vshrl.u32 %v1001, 7
    %v1003 = vsub.s32 %v1000, %v1002
    %v1004 = vrot.slane %v990, %v1003
    %v1005 = vcombine.low %v972, %v988
    %v1006 = vcombine.high %v972, %v988
    %v1008 = vunpack.c.l.s4 1934713408
    %v1009 = vunpack.c.0.s8 %v1008
    %v1010 = vlaneseq
    %v1011 = vshrl.u32 %v1010, 7
    %v1012 = vsub.s32 %v1009, %v1011
    %v1013 = vrot.slane %v1005, %v1012
    %v1015 = vunpack.c.l.s4 1934713408
    %v1016 = vunpack.c.0.s8 %v1015
    %v1017 = vlaneseq
    %v1018 = vshrl.u32 %v1017, 7
    %v1019 = vsub.s32 %v1016, %v1018
    %v1020 = vrot.slane %v1006, %v1019
    %v1021 = vcombine.high %v997, 0.0
    %v1022 = vcombine.high %v1004, 0.0
    %v1023 = vcombine.high %v1013, 0.0
    %v1024 = vcombine.high %v1020, 0.0
    %v1025 = vcombine.low %v929, %v936
    %v1027 = vunpack.c.l.s4 1983009808
    %v1028 = vunpack.c.0.s8 %v1027
    %v1029 = vlaneseq
    %v1030 = vshrl.u32 %v1029, 7
    %v1031 = vsub.s32 %v1028, %v1030
    %v1032 = vrot.slane %v1025, %v1031
    %v1033 = vcombine.low %v953, %v954
    %v1035 = vunpack.c.l.s4 1983009808
    %v1036 = vunpack.c.0.s8 %v1035
    %v1037 = vlaneseq
    %v1038 = vshrl.u32 %v1037, 7
    %v1039 = vsub.s32 %v1036, %v1038
    %v1040 = vrot.slane %v1033, %v1039
    %v1041 = vcombine.low %v945, %v952
    %v1043 = vunpack.c.l.s4 1983009808
    %v1044 = vunpack.c.0.s8 %v1043
    %v1045 = vlaneseq
    %v1046 = vshrl.u32 %v1045, 7
    %v1047 = vsub.s32 %v1044, %v1046
    %v1048 = vrot.slane %v1041, %v1047
    %v1049 = vcombine.low %v955, %v956
    %v1051 = vunpack.c.l.s4 1983009808
    %v1052 = vunpack.c.0.s8 %v1051
    %v1053 = vlaneseq
    %v1054 = vshrl.u32 %v1053, 7
    %v1055 = vsub.s32 %v1052, %v1054
    %v1056 = vrot.slane %v1049, %v1055
    %v1057 = vcombine.low %v1032, %v1040
    %v1058 = vcombine.high %v1032, %v1040
    %v1060 = vunpack.c.l.s4 1934713408
    %v1061 = vunpack.c.0.s8 %v1060
    %v1062 = vlaneseq
    %v1063 = vshrl.u32 %v1062, 7
    %v1064 = vsub.s32 %v1061, %v1063
    %v1065 = vrot.slane %v1057, %v1064
    %v1067 = vunpack.c.l.s4 1934713408
    %v1068 = vunpack.c.0.s8 %v1067
    %v1069 = vlaneseq
    %v1070 = vshrl.u32 %v1069, 7
    %v1071 = vsub.s32 %v1068, %v1070
    %v1072 = vrot.slane %v1058, %v1071
    %v1073 = vcombine.low %v1048, %v1056
    %v1074 = vcombine.high %v1048, %v1056
    %v1076 = vunpack.c.l.s4 1934713408
    %v1077 = vunpack.c.0.s8 %v1076
    %v1078 = vlaneseq
    %v1079 = vshrl.u32 %v1078, 7
    %v1080 = vsub.s32 %v1077, %v1079
    %v1081 = vrot.slane %v1073, %v1080
    %v1083 = vunpack.c.l.s4 1934713408
    %v1084 = vunpack.c.0.s8 %v1083
    %v1085 = vlaneseq
    %v1086 = vshrl.u32 %v1085, 7
    %v1087 = vsub.s32 %v1084, %v1086
    %v1088 = vrot.slane %v1074, %v1087
    %v1089 = vcombine.low %v1065, %v1081
    %v1090 = vcombine.high %v1065, %v1081
    %v1091 = vcombine.low %v1072, %v1088
    %v1092 = vcombine.high %v1072, %v1088
    %v1093 = vcombine.low %v997, %v1004
    %v1095 = vunpack.c.l.s4 1983009808
    %v1096 = vunpack.c.0.s8 %v1095
    %v1097 = vlaneseq
    %v1098 = vshrl.u32 %v1097, 7
    %v1099 = vsub.s32 %v1096, %v1098
    %v1100 = vrot.slane %v1093, %v1099
    %v1101 = vcombine.low %v1021, %v1022
    %v1103 = vunpack.c.l.s4 1983009808
    %v1104 = vunpack.c.0.s8 %v1103
    %v1105 = vlaneseq
    %v1106 = vshrl.u32 %v1105, 7
    %v1107 = vsub.s32 %v1104, %v1106
    %v1108 = vrot.slane %v1101, %v1107
    %v1109 = vcombine.low %v1013, %v1020
    %v1111 = vunpack.c.l.s4 1983009808
    %v1112 = vunpack.c.0.s8 %v1111
    %v1113 = vlaneseq
    %v1114 = vshrl.u32 %v1113, 7
    %v1115 = vsub.s32 %v1112, %v1114
    %v1116 = vrot.slane %v1109, %v1115
    %v1117 = vcombine.low %v1023, %v1024
    %v1119 = vunpack.c.l.s4 1983009808
    %v1120 = vunpack.c.0.s8 %v1119
    %v1121 = vlaneseq
    %v1122 = vshrl.u32 %v1121, 7
    %v1123 = vsub.s32 %v1120, %v1122
    %v1124 = vrot.slane %v1117, %v1123
    %v1125 = vcombine.low %v1100, %v1108
    %v1126 = vcombine.high %v1100, %v1108
    %v1128 = vunpack.c.l.s4 1934713408
    %v1129 = vunpack.c.0.s8 %v1128
    %v1130 = vlaneseq
    %v1131 = vshrl.u32 %v1130, 7
    %v1132 = vsub.s32 %v1129, %v1131
    %v1133 = vrot.slane %v1125, %v1132
    %v1135 = vunpack.c.l.s4 1934713408
    %v1136 = vunpack.c.0.s8 %v1135
    %v1137 = vlaneseq
    %v1138 = vshrl.u32 %v1137, 7
    %v1139 = vsub.s32 %v1136, %v1138
    %v1140 = vrot.slane %v1126, %v1139
    %v1141 = vcombine.low %v1116, %v1124
    %v1142 = vcombine.high %v1116, %v1124
    %v1144 = vunpack.c.l.s4 1934713408
    %v1145 = vunpack.c.0.s8 %v1144
    %v1146 = vlaneseq
    %v1147 = vshrl.u32 %v1146, 7
    %v1148 = vsub.s32 %v1145, %v1147
    %v1149 = vrot.slane %v1141, %v1148
    %v1151 = vunpack.c.l.s4 1934713408
    %v1152 = vunpack.c.0.s8 %v1151
    %v1153 = vlaneseq
    %v1154 = vshrl.u32 %v1153, 7
    %v1155 = vsub.s32 %v1152, %v1154
    %v1156 = vrot.slane %v1142, %v1155
    %v1157 = vcombine.low %v1133, %v1149
    %v1158 = vcombine.high %v1133, %v1149
    %v1159 = vcombine.low %v1140, %v1156
    %v1160 = vcombine.high %v1140, %v1156
    %1161 = vst.msk [vmem:[#allocation10] sm:$0xff] %vm560, %v1089
    %1162 = vst.msk [vmem:[#allocation10 + $0x8] sm:$0xff] %vm560, %v1157
    %1163 = vst.msk [vmem:[#allocation10 + $0x10] sm:$0xff] %vm560, %v1090
    %1164 = vst.msk [vmem:[#allocation10 + $0x18] sm:$0xff] %vm560, %v1158
    %1165 = vst.msk [vmem:[#allocation10 + $0x20] sm:$0xff] %vm560, %v1091
    %1166 = vst.msk [vmem:[#allocation10 + $0x28] sm:$0xff] %vm560, %v1159
    %1167 = vst.msk [vmem:[#allocation10 + $0x30] sm:$0xff] %vm560, %v1092
    %1168 = vst.msk [vmem:[#allocation10 + $0x38] sm:$0xff] %vm560, %v1160
    // Predicated region
    $region22: #{tpu_custom_call.1} parent=1 // pred_check
      _
    $region23: #{tpu_custom_call.1} parent=1 // pred_check_branch
      %1170 = sbr.rel (0) target = $region25
    $region24: #{tpu_custom_call.1} parent=1 // pred_region
      %s1172 = ssub.s32 1024, 1024
      %1173 = vsyncadd [#allocation4], %s1172
      %s1174 = sshll.u32 [#allocation7], 4
      %s1175 = int_to_ptr.vmem [resolvable:$true] %s1174
      %1180 = dma.vmem_to_hbm [thread:$0]  %s1175, 1024, %s3, [#allocation4], 128, 128, 8
    $region25: #{tpu_custom_call.1} parent=1 // pred_fallthru
      _
    // Predicated region
    $region26: #{tpu_custom_call.1} parent=1 // pred_check
      _
    $region27: #{tpu_custom_call.1} parent=1 // pred_check_branch
      %1182 = sbr.rel (0) target = $region29
    $region28: #{tpu_custom_call.1} parent=1 // pred_region
      %s1184 = ssub.s32 1024, 1024
      %1185 = vsyncadd [#allocation9], %s1184
      %s1186 = sshll.u32 [#allocation8], 4
      %s1187 = int_to_ptr.vmem [resolvable:$true] %s1186
      %1192 = dma.vmem_to_hbm [thread:$0]  %s1187, 1024, %s4, [#allocation9], 128, 128, 8
    $region29: #{tpu_custom_call.1} parent=1 // pred_fallthru
      _
    // Predicated region
    $region30: #{tpu_custom_call.1} parent=1 // pred_check
      _
    $region31: #{tpu_custom_call.1} parent=1 // pred_check_branch
      %1194 = sbr.rel (0) target = $region33
    $region32: #{tpu_custom_call.1} parent=1 // pred_region
      %s1196 = ssub.s32 1024, 1024
      %1197 = vsyncadd [#allocation9], %s1196
      %s1198 = sshll.u32 [#allocation10], 4
      %s1199 = int_to_ptr.vmem [resolvable:$true] %s1198
      %1204 = dma.vmem_to_hbm [thread:$0]  %s1199, 1024, %s5, [#allocation9], 128, 128, 8
    $region33: #{tpu_custom_call.1} parent=1 // pred_fallthru
      _
    // Predicated region
    $region34: #{tpu_custom_call.1} parent=1 // pred_check
      _
    $region35: #{tpu_custom_call.1} parent=1 // pred_check_branch
      %1206 = sbr.rel (0) target = $region37
    $region36: #{tpu_custom_call.1} parent=1 // pred_region
      %1207 = dma.done [#allocation4], 1024
    $region37: #{tpu_custom_call.1} parent=1 // pred_fallthru
      _
    // Predicated region
    $region38: #{tpu_custom_call.1} parent=1 // pred_check
      _
    $region39: #{tpu_custom_call.1} parent=1 // pred_check_branch
      %1209 = sbr.rel (0) target = $region41
    $region40: #{tpu_custom_call.1} parent=1 // pred_region
      %1210 = dma.done [#allocation9], 1024
    $region41: #{tpu_custom_call.1} parent=1 // pred_fallthru
      _
    // Predicated region
    $region42: #{tpu_custom_call.1} parent=1 // pred_check
      _
    $region43: #{tpu_custom_call.1} parent=1 // pred_check_branch
      %1212 = sbr.rel (0) target = $region45
    $region44: #{tpu_custom_call.1} parent=1 // pred_region
      %1213 = dma.done [#allocation9], 1024
    $region45: #{tpu_custom_call.1} parent=1 // pred_fallthru
      _
    %1214 = vsyncpa [#allocation3], 1
    %1215 = vsyncpa [#allocation6], 1
    %1216 = vsyncpa [#allocation4], 1
    %1217 = vsyncpa [#allocation9], 1

// kernel: tpu_custom_call.1
$region0: #{tpu_custom_call.1}
  #allocation0 [shape = 'u32[]', space=smem, size = 0x4, offset = 0x4, fixed_abs, tag = 'smem constant byte address 0x4 - core index']
  #allocation1 [shape = 'u32[144,128]{1,0:T(1,128)}', space=vmem, size = 0x12000, scoped, tag = 'internal scratch']
  %s0 = inlined_call_operand.hbm [shape: f32[16,128], index: 0, kind: input, shape index: {}]
  %s1 = inlined_call_operand.hbm [shape: f32[128,384], index: 1, kind: input, shape index: {}]
  %s2 = inlined_call_operand.vmem [shape: f32[1,384], index: 2, kind: input, shape index: {}]
  %s3 = inlined_call_operand.hbm [shape: f32[4,16,32], index: 3, kind: output, shape index: {0}]
  %s4 = inlined_call_operand.hbm [shape: f32[4,16,32], index: 4, kind: output, shape index: {1}]
  %s5 = inlined_call_operand.hbm [shape: f32[4,16,32], index: 5, kind: output, shape index: {2}]
  %6 = xla_tuple %s3, %s4, %s5
  %s7 = sld [smem:[#allocation0]]
  $region46: #{tpu_custom_call.1} parent=0
    _
  %s9 = ssub.s32 1, %s7
  %s10 = scalar_select 0, %s9, %s7
  $region1: #{tpu_custom_call.1} parent=0
    #allocation2 [shape = 'u8[8192]{0}', space=vmem, size = 0x2000, scoped, tag = 'input window, operand 0, single buffered']
    #allocation3 [shape = 's32[1]{0}', space=sflag, size = 0x4, scoped, tag = 'scoped memory for tpu_custom_call.1']
    #allocation4 [shape = 's32[1]{0}', space=sflag, size = 0x4, scoped, tag = 'scoped memory for tpu_custom_call.1']
    #allocation5 [shape = 'u8[196608]{0}', space=vmem, size = 0x30000, scoped, tag = 'input window, operand 1, single buffered']
    #allocation6 [shape = 's32[1]{0}', space=sflag, size = 0x4, scoped, tag = 'scoped memory for tpu_custom_call.1']
    #allocation7 [shape = 'u8[32768]{0}', space=vmem, size = 0x8000, scoped, tag = 'output window, operand 0, single buffered']
    #allocation8 [shape = 'u8[32768]{0}', space=vmem, size = 0x8000, scoped, tag = 'output window, operand 1, single buffered']
    #allocation9 [shape = 's32[1]{0}', space=sflag, size = 0x4, scoped, tag = 'scoped memory for tpu_custom_call.1']
    #allocation10 [shape = 'u8[32768]{0}', space=vmem, size = 0x8000, scoped, tag = 'output window, operand 2, single buffered']
    %11 = vsyncpa [#allocation3], 0
    %12 = vsyncpa [#allocation6], 0
    %13 = vsyncpa [#allocation4], 0
    %14 = vsyncpa [#allocation9], 0
    // Predicated region
    $region2: #{tpu_custom_call.1} parent=1 // pred_check
      _
    $region3: #{tpu_custom_call.1} parent=1 // pred_check_branch
      %16 = sbr.rel (0) target = $region5
    $region4: #{tpu_custom_call.1} parent=1 // pred_region
      %s18 = ssub.s32 256, 256
      %19 = vsyncadd [#allocation3], %s18
      %s20 = sshll.u32 [#allocation2], 4
      %s21 = int_to_ptr.vmem [resolvable:$true] %s20
      %26 = dma.hbm_to_vmem [thread:$0]  %s0, 256, %s21, [#allocation3], 128, 128, 8
    $region5: #{tpu_custom_call.1} parent=1 // pred_fallthru
      _
    // Predicated region
    $region6: #{tpu_custom_call.1} parent=1 // pred_check
      _
    $region7: #{tpu_custom_call.1} parent=1 // pred_check_branch
      %28 = sbr.rel (0) target = $region9
    $region8: #{tpu_custom_call.1} parent=1 // pred_region
      %s30 = ssub.s32 6144, 6144
      %31 = vsyncadd [#allocation6], %s30
      %s32 = sshll.u32 [#allocation5], 4
      %s33 = int_to_ptr.vmem [resolvable:$true] %s32
      %38 = dma.hbm_to_vmem [thread:$0]  %s1, 6144, %s33, [#allocation6], 384, 384, 24
    $region9: #{tpu_custom_call.1} parent=1 // pred_fallthru
      _
    // Predicated region
    $region10: #{tpu_custom_call.1} parent=1 // pred_check
      _
    $region11: #{tpu_custom_call.1} parent=1 // pred_check_branch
      %40 = sbr.rel (0) target = $region13
    $region12: #{tpu_custom_call.1} parent=1 // pred_region
      _
    $region13: #{tpu_custom_call.1} parent=1 // pred_fallthru
      _
    // Predicated region
    $region14: #{tpu_custom_call.1} parent=1 // pred_check
      _
    $region15: #{tpu_custom_call.1} parent=1 // pred_check_branch
      %42 = sbr.rel (0) target = $region17
    $region16: #{tpu_custom_call.1} parent=1 // pred_region
      %43 = dma.done [#allocation3], 256
    $region17: #{tpu_custom_call.1} parent=1 // pred_fallthru
      _
    // Predicated region
    $region18: #{tpu_custom_call.1} parent=1 // pred_check
      _
    $region19: #{tpu_custom_call.1} parent=1 // pred_check_branch
      %45 = sbr.rel (0) target = $region21
    $region20: #{tpu_custom_call.1} parent=1 // pred_region
      %46 = dma.done [#allocation6], 6144
    $region21: #{tpu_custom_call.1} parent=1 // pred_fallthru
      _
    %v47 = vld [vmem:[#allocation2] sm:$0xff]
    %v48 = vld [vmem:[#allocation2 + $0x8] sm:$0xff]
    %v49 = vld [vmem:[#allocation5] sm:$0xff]
    %v50 = vld [vmem:[#allocation5 + $0x8] sm:$0xff]
    %v51 = vld [vmem:[#allocation5 + $0x10] sm:$0xff]
    %v52 = vld [vmem:[#allocation5 + $0x18] sm:$0xff]
    %v53 = vld [vmem:[#allocation5 + $0x20] sm:$0xff]
    %v54 = vld [vmem:[#allocation5 + $0x28] sm:$0xff]
    %v55 = vld [vmem:[#allocation5 + $0x30] sm:$0xff]
    %v56 = vld [vmem:[#allocation5 + $0x38] sm:$0xff]
    %v57 = vld [vmem:[#allocation5 + $0x40] sm:$0xff]
    %v58 = vld [vmem:[#allocation5 + $0x48] sm:$0xff]
    %v59 = vld [vmem:[#allocation5 + $0x50] sm:$0xff]
    %v60 = vld [vmem:[#allocation5 + $0x58] sm:$0xff]
    %v61 = vld [vmem:[#allocation5 + $0x60] sm:$0xff]
    %v62 = vld [vmem:[#allocation5 + $0x68] sm:$0xff]
    %v63 = vld [vmem:[#allocation5 + $0x70] sm:$0xff]
    %v64 = vld [vmem:[#allocation5 + $0x78] sm:$0xff]
    %v65 = vld [vmem:[#allocation5 + $0x80] sm:$0xff]
    %v66 = vld [vmem:[#allocation5 + $0x88] sm:$0xff]
    %v67 = vld [vmem:[#allocation5 + $0x90] sm:$0xff]
    %v68 = vld [vmem:[#allocation5 + $0x98] sm:$0xff]
    %v69 = vld [vmem:[#allocation5 + $0xa0] sm:$0xff]
    %v70 = vld [vmem:[#allocation5 + $0xa8] sm:$0xff]
    %v71 = vld [vmem:[#allocation5 + $0xb0] sm:$0xff]
    %v72 = vld [vmem:[#allocation5 + $0xb8] sm:$0xff]
    %v73 = vld [vmem:[#allocation5 + $0xc0] sm:$0xff]
    %v74 = vld [vmem:[#allocation5 + $0xc8] sm:$0xff]
    %v75 = vld [vmem:[#allocation5 + $0xd0] sm:$0xff]
    %v76 = vld [vmem:[#allocation5 + $0xd8] sm:$0xff]
    %v77 = vld [vmem:[#allocation5 + $0xe0] sm:$0xff]
    %v78 = vld [vmem:[#allocation5 + $0xe8] sm:$0xff]
    %v79 = vld [vmem:[#allocation5 + $0xf0] sm:$0xff]
    %v80 = vld [vmem:[#allocation5 + $0xf8] sm:$0xff]
    %v81 = vld [vmem:[#allocation5 + $0x100] sm:$0xff]
    %v82 = vld [vmem:[#allocation5 + $0x108] sm:$0xff]
    %v83 = vld [vmem:[#allocation5 + $0x110] sm:$0xff]
    %v84 = vld [vmem:[#allocation5 + $0x118] sm:$0xff]
    %v85 = vld [vmem:[#allocation5 + $0x120] sm:$0xff]
    %v86 = vld [vmem:[#allocation5 + $0x128] sm:$0xff]
    %v87 = vld [vmem:[#allocation5 + $0x130] sm:$0xff]
    %v88 = vld [vmem:[#allocation5 + $0x138] sm:$0xff]
    %v89 = vld [vmem:[#allocation5 + $0x140] sm:$0xff]
    %v90 = vld [vmem:[#allocation5 + $0x148] sm:$0xff]
    %v91 = vld [vmem:[#allocation5 + $0x150] sm:$0xff]
    %v92 = vld [vmem:[#allocation5 + $0x158] sm:$0xff]
    %v93 = vld [vmem:[#allocation5 + $0x160] sm:$0xff]
    %v94 = vld [vmem:[#allocation5 + $0x168] sm:$0xff]
    %v95 = vld [vmem:[#allocation5 + $0x170] sm:$0xff]
    %v96 = vld [vmem:[#allocation5 + $0x178] sm:$0xff]
    %v97 = vld [vmem:[%s2] sm:$0x7]
    %v99 = vlaneseq
    %v100 = vshrl.u32 %v99, 7
    %v101 = vsub.s32 0, %v100
    %v102 = vrot.slane %v97, %v101
    %v103 = vlaneseq
    %v104 = vshrl.u32 %v103, 7
    %v105 = vsub.s32 1, %v104
    %v106 = vrot.slane %v97, %v105
    %v107 = vlaneseq
    %v108 = vshrl.u32 %v107, 7
    %v109 = vsub.s32 2, %v108
    %v110 = vrot.slane %v97, %v109
    %114 = vmatprep.subr.mxu0 %v50
    %115 = vmatpush1.msra.mxu0 %v49
    %116 = vmatprep.subr.mxu0 %v53
    %117 = vmatpush1.msra.mxu0 %v52
    %118 = vmatprep.subr.mxu0 %v56
    %119 = vmatpush1.msra.mxu0 %v55
    %120 = vmatprep.subr.mxu0 %v59
    %121 = vmatpush1.msra.mxu0 %v58
    %122 = vmatprep.subr.mxu0 %v62
    %123 = vmatpush1.msra.mxu0 %v61
    %124 = vmatprep.subr.mxu0 %v65
    %125 = vmatpush1.msra.mxu0 %v64
    %126 = vmatprep.subr.mxu0 %v68
    %127 = vmatpush1.msra.mxu0 %v67
    %128 = vmatprep.subr.mxu0 %v71
    %129 = vmatpush1.msra.mxu0 %v70
    %130 = vmatprep.subr.mxu0 %v74
    %131 = vmatpush1.msra.mxu0 %v73
    %132 = vmatprep.subr.mxu0 %v77
    %133 = vmatpush1.msra.mxu0 %v76
    %134 = vmatprep.subr.mxu0 %v80
    %135 = vmatpush1.msra.mxu0 %v79
    %136 = vmatprep.subr.mxu0 %v83
    %137 = vmatpush1.msra.mxu0 %v82
    %138 = vmatprep.subr.mxu0 %v86
    %139 = vmatpush1.msra.mxu0 %v85
    %140 = vmatprep.subr.mxu0 %v89
    %141 = vmatpush1.msra.mxu0 %v88
    %142 = vmatprep.subr.mxu0 %v92
    %143 = vmatpush1.msra.mxu0 %v91
    %144 = vmatprep.subr.mxu0 %v95
    %145 = vmatpush1.msra.mxu0 %v94
    %146 = vmatprep.subr.mxu0 0.0
    %147 = vmatpush1.msra.mxu0 0.0
    %148 = vmatprep.subr.mxu0 0.0
    %149 = vmatpush1.msra.mxu0 0.0
    %150 = vmatprep.subr.mxu0 0.0
    %151 = vmatpush1.msra.mxu0 0.0
    %152 = vmatprep.subr.mxu0 0.0
    %153 = vmatpush1.msra.mxu0 0.0
    %154 = vmatprep.subr.mxu0 0.0
    %155 = vmatpush1.msra.mxu0 0.0
    %156 = vmatprep.subr.mxu0 0.0
    %157 = vmatpush1.msra.mxu0 0.0
    %158 = vmatprep.subr.mxu0 0.0
    %159 = vmatpush1.msra.mxu0 0.0
    %160 = vmatprep.subr.mxu0 0.0
    %161 = vmatpush1.msra.mxu0 0.0
    %162 = vmatprep.subr.mxu0 0.0
    %163 = vmatpush1.msra.mxu0 0.0
    %164 = vmatprep.subr.mxu0 0.0
    %165 = vmatpush1.msra.mxu0 0.0
    %166 = vmatprep.subr.mxu0 0.0
    %167 = vmatpush1.msra.mxu0 0.0
    %168 = vmatprep.subr.mxu0 0.0
    %169 = vmatpush1.msra.mxu0 0.0
    %170 = vmatprep.subr.mxu0 0.0
    %171 = vmatpush1.msra.mxu0 0.0
    %172 = vmatprep.subr.mxu0 0.0
    %173 = vmatpush1.msra.mxu0 0.0
    %174 = vmatprep.subr.mxu0 0.0
    %175 = vmatpush1.msra.mxu0 0.0
    %176 = vmatprep.subr.mxu0 0.0
    %177 = vmatpush1.msra.mxu0 0.0
    %178 = vmatprep.mubr.f32.mxu0 0.0
    %179 = vmatmul.mubr.f32.gmra.mrb[0].mxu0 %v47
    %v180 = vpop.f32.mrb[0].mxu0
    %v181 = vadd.f32 %v102, %v180
    %v182 = vpop.f32.mrb[0].mxu0
    %v183 = vadd.f32 %v106, %v182
    %184 = vmatprep.mubr.f32.mxu0 0.0
    %185 = vmatmul.mubr.f32.gmra.mrb[0].mxu0 %v48
    %v186 = vpop.f32.mrb[0].mxu0
    %v187 = vadd.f32 %v102, %v186
    %v188 = vpop.f32.mrb[0].mxu0
    %v189 = vadd.f32 %v106, %v188
    %190 = vdwg.mxu0
    %191 = vmatprep.subr.mxu0 0.0
    %192 = vmatpush1.msra.mxu0 %v51
    %193 = vmatprep.subr.mxu0 0.0
    %194 = vmatpush1.msra.mxu0 %v54
    %195 = vmatprep.subr.mxu0 0.0
    %196 = vmatpush1.msra.mxu0 %v57
    %197 = vmatprep.subr.mxu0 0.0
    %198 = vmatpush1.msra.mxu0 %v60
    %199 = vmatprep.subr.mxu0 0.0
    %200 = vmatpush1.msra.mxu0 %v63
    %201 = vmatprep.subr.mxu0 0.0
    %202 = vmatpush1.msra.mxu0 %v66
    %203 = vmatprep.subr.mxu0 0.0
    %204 = vmatpush1.msra.mxu0 %v69
    %205 = vmatprep.subr.mxu0 0.0
    %206 = vmatpush1.msra.mxu0 %v72
    %207 = vmatprep.subr.mxu0 0.0
    %208 = vmatpush1.msra.mxu0 %v75
    %209 = vmatprep.subr.mxu0 0.0
    %210 = vmatpush1.msra.mxu0 %v78
    %211 = vmatprep.subr.mxu0 0.0
    %212 = vmatpush1.msra.mxu0 %v81
    %213 = vmatprep.subr.mxu0 0.0
    %214 = vmatpush1.msra.mxu0 %v84
    %215 = vmatprep.subr.mxu0 0.0
    %216 = vmatpush1.msra.mxu0 %v87
    %217 = vmatprep.subr.mxu0 0.0
    %218 = vmatpush1.msra.mxu0 %v90
    %219 = vmatprep.subr.mxu0 0.0
    %220 = vmatpush1.msra.mxu0 %v93
    %221 = vmatprep.subr.mxu0 0.0
    %222 = vmatpush1.msra.mxu0 %v96
    %223 = vmatprep.subr.mxu0 0.0
    %224 = vmatpush1.msra.mxu0 0.0
    %225 = vmatprep.subr.mxu0 0.0
    %226 = vmatpush1.msra.mxu0 0.0
    %227 = vmatprep.subr.mxu0 0.0
    %228 = vmatpush1.msra.mxu0 0.0
    %229 = vmatprep.subr.mxu0 0.0
    %230 = vmatpush1.msra.mxu0 0.0
    %231 = vmatprep.subr.mxu0 0.0
    %232 = vmatpush1.msra.mxu0 0.0
    %233 = vmatprep.subr.mxu0 0.0
    %234 = vmatpush1.msra.mxu0 0.0
    %235 = vmatprep.subr.mxu0 0.0
    %236 = vmatpush1.msra.mxu0 0.0
    %237 = vmatprep.subr.mxu0 0.0
    %238 = vmatpush1.msra.mxu0 0.0
    %239 = vmatprep.subr.mxu0 0.0
    %240 = vmatpush1.msra.mxu0 0.0
    %241 = vmatprep.subr.mxu0 0.0
    %242 = vmatpush1.msra.mxu0 0.0
    %243 = vmatprep.subr.mxu0 0.0
    %244 = vmatpush1.msra.mxu0 0.0
    %245 = vmatprep.subr.mxu0 0.0
    %246 = vmatpush1.msra.mxu0 0.0
    %247 = vmatprep.subr.mxu0 0.0
    %248 = vmatpush1.msra.mxu0 0.0
    %249 = vmatprep.subr.mxu0 0.0
    %250 = vmatpush1.msra.mxu0 0.0
    %251 = vmatprep.subr.mxu0 0.0
    %252 = vmatpush1.msra.mxu0 0.0
    %253 = vmatprep.subr.mxu0 0.0
    %254 = vmatpush1.msra.mxu0 0.0
    %255 = vmatprep.mubr.f32.mxu0 0.0
    %256 = vmatmul.mubr.f32.gmra.mrb[0].mxu0 %v47
    %v257 = vpop.f32.mrb[0].mxu0
    %v258 = vadd.f32 %v110, %v257
    %v259 = vpop.f32.mrb[0].mxu0
    %260 = vmatprep.mubr.f32.mxu0 0.0
    %261 = vmatmul.mubr.f32.gmra.mrb[0].mxu0 %v48
    %v262 = vpop.f32.mrb[0].mxu0
    %v263 = vadd.f32 %v110, %v262
    %v264 = vpop.f32.mrb[0].mxu0
    %265 = vdwg.mxu0
    %v266 = vmul.f32 %v181, 0.17677669
    %v267 = vmul.f32 %v187, 0.17677669
    %270 = vrot.lane.b32.xlu0 %v266, 96
    %v271 = vpop.permute.xlu0 %270
    %272 = vrot.lane.b32.xlu0 %v267, 96
    %v273 = vpop.permute.xlu0 %272
    %276 = vrot.lane.b32.xlu0 %v266, 64
    %v277 = vpop.permute.xlu0 %276
    %278 = vrot.lane.b32.xlu0 %v267, 64
    %v279 = vpop.permute.xlu0 %278
    %282 = vrot.lane.b32.xlu0 %v266, 32
    %v283 = vpop.permute.xlu0 %282
    %284 = vrot.lane.b32.xlu0 %v267, 32
    %v285 = vpop.permute.xlu0 %284
    %v288 = vcombine.low %v266, %v277
    %v289 = vcombine.high %v266, %v277
    %v291 = vunpack.c.l.s4 1983009808
    %v292 = vunpack.c.0.s8 %v291
    %v293 = vlaneseq
    %v294 = vshrl.u32 %v293, 7
    %v295 = vsub.s32 %v292, %v294
    %v296 = vrot.slane %v288, %v295
    %v298 = vunpack.c.l.s4 1983009808
    %v299 = vunpack.c.0.s8 %v298
    %v300 = vlaneseq
    %v301 = vshrl.u32 %v300, 7
    %v302 = vsub.s32 %v299, %v301
    %v303 = vrot.slane %v289, %v302
    %v304 = vcombine.low %v271, %v283
    %v305 = vcombine.high %v271, %v283
    %v307 = vunpack.c.l.s4 1983009808
    %v308 = vunpack.c.0.s8 %v307
    %v309 = vlaneseq
    %v310 = vshrl.u32 %v309, 7
    %v311 = vsub.s32 %v308, %v310
    %v312 = vrot.slane %v304, %v311
    %v314 = vunpack.c.l.s4 1983009808
    %v315 = vunpack.c.0.s8 %v314
    %v316 = vlaneseq
    %v317 = vshrl.u32 %v316, 7
    %v318 = vsub.s32 %v315, %v317
    %v319 = vrot.slane %v305, %v318
    %v320 = vcombine.low %v296, %v312
    %v321 = vcombine.high %v296, %v312
    %v323 = vunpack.c.l.s4 1934713408
    %v324 = vunpack.c.0.s8 %v323
    %v325 = vlaneseq
    %v326 = vshrl.u32 %v325, 7
    %v327 = vsub.s32 %v324, %v326
    %v328 = vrot.slane %v320, %v327
    %v330 = vunpack.c.l.s4 1934713408
    %v331 = vunpack.c.0.s8 %v330
    %v332 = vlaneseq
    %v333 = vshrl.u32 %v332, 7
    %v334 = vsub.s32 %v331, %v333
    %v335 = vrot.slane %v321, %v334
    %v336 = vcombine.low %v303, %v319
    %v337 = vcombine.high %v303, %v319
    %v339 = vunpack.c.l.s4 1934713408
    %v340 = vunpack.c.0.s8 %v339
    %v341 = vlaneseq
    %v342 = vshrl.u32 %v341, 7
    %v343 = vsub.s32 %v340, %v342
    %v344 = vrot.slane %v336, %v343
    %v346 = vunpack.c.l.s4 1934713408
    %v347 = vunpack.c.0.s8 %v346
    %v348 = vlaneseq
    %v349 = vshrl.u32 %v348, 7
    %v350 = vsub.s32 %v347, %v349
    %v351 = vrot.slane %v337, %v350
    %v352 = vcombine.high %v328, 0.0
    %v353 = vcombine.high %v335, 0.0
    %v354 = vcombine.high %v344, 0.0
    %v355 = vcombine.high %v351, 0.0
    %v356 = vcombine.low %v267, %v279
    %v357 = vcombine.high %v267, %v279
    %v359 = vunpack.c.l.s4 1983009808
    %v360 = vunpack.c.0.s8 %v359
    %v361 = vlaneseq
    %v362 = vshrl.u32 %v361, 7
    %v363 = vsub.s32 %v360, %v362
    %v364 = vrot.slane %v356, %v363
    %v366 = vunpack.c.l.s4 1983009808
    %v367 = vunpack.c.0.s8 %v366
    %v368 = vlaneseq
    %v369 = vshrl.u32 %v368, 7
    %v370 = vsub.s32 %v367, %v369
    %v371 = vrot.slane %v357, %v370
    %v372 = vcombine.low %v273, %v285
    %v373 = vcombine.high %v273, %v285
    %v375 = vunpack.c.l.s4 1983009808
    %v376 = vunpack.c.0.s8 %v375
    %v377 = vlaneseq
    %v378 = vshrl.u32 %v377, 7
    %v379 = vsub.s32 %v376, %v378
    %v380 = vrot.slane %v372, %v379
    %v382 = vunpack.c.l.s4 1983009808
    %v383 = vunpack.c.0.s8 %v382
    %v384 = vlaneseq
    %v385 = vshrl.u32 %v384, 7
    %v386 = vsub.s32 %v383, %v385
    %v387 = vrot.slane %v373, %v386
    %v388 = vcombine.low %v364, %v380
    %v389 = vcombine.high %v364, %v380
    %v391 = vunpack.c.l.s4 1934713408
    %v392 = vunpack.c.0.s8 %v391
    %v393 = vlaneseq
    %v394 = vshrl.u32 %v393, 7
    %v395 = vsub.s32 %v392, %v394
    %v396 = vrot.slane %v388, %v395
    %v398 = vunpack.c.l.s4 1934713408
    %v399 = vunpack.c.0.s8 %v398
    %v400 = vlaneseq
    %v401 = vshrl.u32 %v400, 7
    %v402 = vsub.s32 %v399, %v401
    %v403 = vrot.slane %v389, %v402
    %v404 = vcombine.low %v371, %v387
    %v405 = vcombine.high %v371, %v387
    %v407 = vunpack.c.l.s4 1934713408
    %v408 = vunpack.c.0.s8 %v407
    %v409 = vlaneseq
    %v410 = vshrl.u32 %v409, 7
    %v411 = vsub.s32 %v408, %v410
    %v412 = vrot.slane %v404, %v411
    %v414 = vunpack.c.l.s4 1934713408
    %v415 = vunpack.c.0.s8 %v414
    %v416 = vlaneseq
    %v417 = vshrl.u32 %v416, 7
    %v418 = vsub.s32 %v415, %v417
    %v419 = vrot.slane %v405, %v418
    %v420 = vcombine.high %v396, 0.0
    %v421 = vcombine.high %v403, 0.0
    %v422 = vcombine.high %v412, 0.0
    %v423 = vcombine.high %v419, 0.0
    %v424 = vcombine.low %v328, %v335
    %v426 = vunpack.c.l.s4 1983009808
    %v427 = vunpack.c.0.s8 %v426
    %v428 = vlaneseq
    %v429 = vshrl.u32 %v428, 7
    %v430 = vsub.s32 %v427, %v429
    %v431 = vrot.slane %v424, %v430
    %v432 = vcombine.low %v352, %v353
    %v434 = vunpack.c.l.s4 1983009808
    %v435 = vunpack.c.0.s8 %v434
    %v436 = vlaneseq
    %v437 = vshrl.u32 %v436, 7
    %v438 = vsub.s32 %v435, %v437
    %v439 = vrot.slane %v432, %v438
    %v440 = vcombine.low %v344, %v351
    %v442 = vunpack.c.l.s4 1983009808
    %v443 = vunpack.c.0.s8 %v442
    %v444 = vlaneseq
    %v445 = vshrl.u32 %v444, 7
    %v446 = vsub.s32 %v443, %v445
    %v447 = vrot.slane %v440, %v446
    %v448 = vcombine.low %v354, %v355
    %v450 = vunpack.c.l.s4 1983009808
    %v451 = vunpack.c.0.s8 %v450
    %v452 = vlaneseq
    %v453 = vshrl.u32 %v452, 7
    %v454 = vsub.s32 %v451, %v453
    %v455 = vrot.slane %v448, %v454
    %v456 = vcombine.low %v431, %v439
    %v457 = vcombine.high %v431, %v439
    %v459 = vunpack.c.l.s4 1934713408
    %v460 = vunpack.c.0.s8 %v459
    %v461 = vlaneseq
    %v462 = vshrl.u32 %v461, 7
    %v463 = vsub.s32 %v460, %v462
    %v464 = vrot.slane %v456, %v463
    %v466 = vunpack.c.l.s4 1934713408
    %v467 = vunpack.c.0.s8 %v466
    %v468 = vlaneseq
    %v469 = vshrl.u32 %v468, 7
    %v470 = vsub.s32 %v467, %v469
    %v471 = vrot.slane %v457, %v470
    %v472 = vcombine.low %v447, %v455
    %v473 = vcombine.high %v447, %v455
    %v475 = vunpack.c.l.s4 1934713408
    %v476 = vunpack.c.0.s8 %v475
    %v477 = vlaneseq
    %v478 = vshrl.u32 %v477, 7
    %v479 = vsub.s32 %v476, %v478
    %v480 = vrot.slane %v472, %v479
    %v482 = vunpack.c.l.s4 1934713408
    %v483 = vunpack.c.0.s8 %v482
    %v484 = vlaneseq
    %v485 = vshrl.u32 %v484, 7
    %v486 = vsub.s32 %v483, %v485
    %v487 = vrot.slane %v473, %v486
    %v488 = vcombine.low %v464, %v480
    %v489 = vcombine.high %v464, %v480
    %v490 = vcombine.low %v471, %v487
    %v491 = vcombine.high %v471, %v487
    %v492 = vcombine.low %v396, %v403
    %v494 = vunpack.c.l.s4 1983009808
    %v495 = vunpack.c.0.s8 %v494
    %v496 = vlaneseq
    %v497 = vshrl.u32 %v496, 7
    %v498 = vsub.s32 %v495, %v497
    %v499 = vrot.slane %v492, %v498
    %v500 = vcombine.low %v420, %v421
    %v502 = vunpack.c.l.s4 1983009808
    %v503 = vunpack.c.0.s8 %v502
    %v504 = vlaneseq
    %v505 = vshrl.u32 %v504, 7
    %v506 = vsub.s32 %v503, %v505
    %v507 = vrot.slane %v500, %v506
    %v508 = vcombine.low %v412, %v419
    %v510 = vunpack.c.l.s4 1983009808
    %v511 = vunpack.c.0.s8 %v510
    %v512 = vlaneseq
    %v513 = vshrl.u32 %v512, 7
    %v514 = vsub.s32 %v511, %v513
    %v515 = vrot.slane %v508, %v514
    %v516 = vcombine.low %v422, %v423
    %v518 = vunpack.c.l.s4 1983009808
    %v519 = vunpack.c.0.s8 %v518
    %v520 = vlaneseq
    %v521 = vshrl.u32 %v520, 7
    %v522 = vsub.s32 %v519, %v521
    %v523 = vrot.slane %v516, %v522
    %v524 = vcombine.low %v499, %v507
    %v525 = vcombine.high %v499, %v507
    %v527 = vunpack.c.l.s4 1934713408
    %v528 = vunpack.c.0.s8 %v527
    %v529 = vlaneseq
    %v530 = vshrl.u32 %v529, 7
    %v531 = vsub.s32 %v528, %v530
    %v532 = vrot.slane %v524, %v531
    %v534 = vunpack.c.l.s4 1934713408
    %v535 = vunpack.c.0.s8 %v534
    %v536 = vlaneseq
    %v537 = vshrl.u32 %v536, 7
    %v538 = vsub.s32 %v535, %v537
    %v539 = vrot.slane %v525, %v538
    %v540 = vcombine.low %v515, %v523
    %v541 = vcombine.high %v515, %v523
    %v543 = vunpack.c.l.s4 1934713408
    %v544 = vunpack.c.0.s8 %v543
    %v545 = vlaneseq
    %v546 = vshrl.u32 %v545, 7
    %v547 = vsub.s32 %v544, %v546
    %v548 = vrot.slane %v540, %v547
    %v550 = vunpack.c.l.s4 1934713408
    %v551 = vunpack.c.0.s8 %v550
    %v552 = vlaneseq
    %v553 = vshrl.u32 %v552, 7
    %v554 = vsub.s32 %v551, %v553
    %v555 = vrot.slane %v541, %v554
    %v556 = vcombine.low %v532, %v548
    %v557 = vcombine.high %v532, %v548
    %v558 = vcombine.low %v539, %v555
    %v559 = vcombine.high %v539, %v555
    %vm560 = vcmask 261120
    %561 = vst.msk [vmem:[#allocation7] sm:$0xff] %vm560, %v488
    %562 = vst.msk [vmem:[#allocation7 + $0x8] sm:$0xff] %vm560, %v556
    %563 = vst.msk [vmem:[#allocation7 + $0x10] sm:$0xff] %vm560, %v489
    %564 = vst.msk [vmem:[#allocation7 + $0x18] sm:$0xff] %vm560, %v557
    %565 = vst.msk [vmem:[#allocation7 + $0x20] sm:$0xff] %vm560, %v490
    %566 = vst.msk [vmem:[#allocation7 + $0x28] sm:$0xff] %vm560, %v558
    %567 = vst.msk [vmem:[#allocation7 + $0x30] sm:$0xff] %vm560, %v491
    %568 = vst.msk [vmem:[#allocation7 + $0x38] sm:$0xff] %vm560, %v559
    %571 = vrot.lane.b32.xlu0 %v183, 96
    %v572 = vpop.permute.xlu0 %571
    %573 = vrot.lane.b32.xlu0 %v189, 96
    %v574 = vpop.permute.xlu0 %573
    %577 = vrot.lane.b32.xlu0 %v183, 64
    %v578 = vpop.permute.xlu0 %577
    %579 = vrot.lane.b32.xlu0 %v189, 64
    %v580 = vpop.permute.xlu0 %579
    %583 = vrot.lane.b32.xlu0 %v183, 32
    %v584 = vpop.permute.xlu0 %583
    %585 = vrot.lane.b32.xlu0 %v189, 32
    %v586 = vpop.permute.xlu0 %585
    %v589 = vcombine.low %v183, %v578
    %v590 = vcombine.high %v183, %v578
    %v592 = vunpack.c.l.s4 1983009808
    %v593 = vunpack.c.0.s8 %v592
    %v594 = vlaneseq
    %v595 = vshrl.u32 %v594, 7
    %v596 = vsub.s32 %v593, %v595
    %v597 = vrot.slane %v589, %v596
    %v599 = vunpack.c.l.s4 1983009808
    %v600 = vunpack.c.0.s8 %v599
    %v601 = vlaneseq
    %v602 = vshrl.u32 %v601, 7
    %v603 = vsub.s32 %v600, %v602
    %v604 = vrot.slane %v590, %v603
    %v605 = vcombine.low %v572, %v584
    %v606 = vcombine.high %v572, %v584
    %v608 = vunpack.c.l.s4 1983009808
    %v609 = vunpack.c.0.s8 %v608
    %v610 = vlaneseq
    %v611 = vshrl.u32 %v610, 7
    %v612 = vsub.s32 %v609, %v611
    %v613 = vrot.slane %v605, %v612
    %v615 = vunpack.c.l.s4 1983009808
    %v616 = vunpack.c.0.s8 %v615
    %v617 = vlaneseq
    %v618 = vshrl.u32 %v617, 7
    %v619 = vsub.s32 %v616, %v618
    %v620 = vrot.slane %v606, %v619
    %v621 = vcombine.low %v597, %v613
    %v622 = vcombine.high %v597, %v613
    %v624 = vunpack.c.l.s4 1934713408
    %v625 = vunpack.c.0.s8 %v624
    %v626 = vlaneseq
    %v627 = vshrl.u32 %v626, 7
    %v628 = vsub.s32 %v625, %v627
    %v629 = vrot.slane %v621, %v628
    %v631 = vunpack.c.l.s4 1934713408
    %v632 = vunpack.c.0.s8 %v631
    %v633 = vlaneseq
    %v634 = vshrl.u32 %v633, 7
    %v635 = vsub.s32 %v632, %v634
    %v636 = vrot.slane %v622, %v635
    %v637 = vcombine.low %v604, %v620
    %v638 = vcombine.high %v604, %v620
    %v640 = vunpack.c.l.s4 1934713408
    %v641 = vunpack.c.0.s8 %v640
    %v642 = vlaneseq
    %v643 = vshrl.u32 %v642, 7
    %v644 = vsub.s32 %v641, %v643
    %v645 = vrot.slane %v637, %v644
    %v647 = vunpack.c.l.s4 1934713408
    %v648 = vunpack.c.0.s8 %v647
    %v649 = vlaneseq
    %v650 = vshrl.u32 %v649, 7
    %v651 = vsub.s32 %v648, %v650
    %v652 = vrot.slane %v638, %v651
    %v653 = vcombine.high %v629, 0.0
    %v654 = vcombine.high %v636, 0.0
    %v655 = vcombine.high %v645, 0.0
    %v656 = vcombine.high %v652, 0.0
    %v657 = vcombine.low %v189, %v580
    %v658 = vcombine.high %v189, %v580
    %v660 = vunpack.c.l.s4 1983009808
    %v661 = vunpack.c.0.s8 %v660
    %v662 = vlaneseq
    %v663 = vshrl.u32 %v662, 7
    %v664 = vsub.s32 %v661, %v663
    %v665 = vrot.slane %v657, %v664
    %v667 = vunpack.c.l.s4 1983009808
    %v668 = vunpack.c.0.s8 %v667
    %v669 = vlaneseq
    %v670 = vshrl.u32 %v669, 7
    %v671 = vsub.s32 %v668, %v670
    %v672 = vrot.slane %v658, %v671
    %v673 = vcombine.low %v574, %v586
    %v674 = vcombine.high %v574, %v586
    %v676 = vunpack.c.l.s4 1983009808
    %v677 = vunpack.c.0.s8 %v676
    %v678 = vlaneseq
    %v679 = vshrl.u32 %v678, 7
    %v680 = vsub.s32 %v677, %v679
    %v681 = vrot.slane %v673, %v680
    %v683 = vunpack.c.l.s4 1983009808
    %v684 = vunpack.c.0.s8 %v683
    %v685 = vlaneseq
    %v686 = vshrl.u32 %v685, 7
    %v687 = vsub.s32 %v684, %v686
    %v688 = vrot.slane %v674, %v687
    %v689 = vcombine.low %v665, %v681
    %v690 = vcombine.high %v665, %v681
    %v692 = vunpack.c.l.s4 1934713408
    %v693 = vunpack.c.0.s8 %v692
    %v694 = vlaneseq
    %v695 = vshrl.u32 %v694, 7
    %v696 = vsub.s32 %v693, %v695
    %v697 = vrot.slane %v689, %v696
    %v699 = vunpack.c.l.s4 1934713408
    %v700 = vunpack.c.0.s8 %v699
    %v701 = vlaneseq
    %v702 = vshrl.u32 %v701, 7
    %v703 = vsub.s32 %v700, %v702
    %v704 = vrot.slane %v690, %v703
    %v705 = vcombine.low %v672, %v688
    %v706 = vcombine.high %v672, %v688
    %v708 = vunpack.c.l.s4 1934713408
    %v709 = vunpack.c.0.s8 %v708
    %v710 = vlaneseq
    %v711 = vshrl.u32 %v710, 7
    %v712 = vsub.s32 %v709, %v711
    %v713 = vrot.slane %v705, %v712
    %v715 = vunpack.c.l.s4 1934713408
    %v716 = vunpack.c.0.s8 %v715
    %v717 = vlaneseq
    %v718 = vshrl.u32 %v717, 7
    %v719 = vsub.s32 %v716, %v718
    %v720 = vrot.slane %v706, %v719
    %v721 = vcombine.high %v697, 0.0
    %v722 = vcombine.high %v704, 0.0
    %v723 = vcombine.high %v713, 0.0
    %v724 = vcombine.high %v720, 0.0
    %v725 = vcombine.low %v629, %v636
    %v727 = vunpack.c.l.s4 1983009808
    %v728 = vunpack.c.0.s8 %v727
    %v729 = vlaneseq
    %v730 = vshrl.u32 %v729, 7
    %v731 = vsub.s32 %v728, %v730
    %v732 = vrot.slane %v725, %v731
    %v733 = vcombine.low %v653, %v654
    %v735 = vunpack.c.l.s4 1983009808
    %v736 = vunpack.c.0.s8 %v735
    %v737 = vlaneseq
    %v738 = vshrl.u32 %v737, 7
    %v739 = vsub.s32 %v736, %v738
    %v740 = vrot.slane %v733, %v739
    %v741 = vcombine.low %v645, %v652
    %v743 = vunpack.c.l.s4 1983009808
    %v744 = vunpack.c.0.s8 %v743
    %v745 = vlaneseq
    %v746 = vshrl.u32 %v745, 7
    %v747 = vsub.s32 %v744, %v746
    %v748 = vrot.slane %v741, %v747
    %v749 = vcombine.low %v655, %v656
    %v751 = vunpack.c.l.s4 1983009808
    %v752 = vunpack.c.0.s8 %v751
    %v753 = vlaneseq
    %v754 = vshrl.u32 %v753, 7
    %v755 = vsub.s32 %v752, %v754
    %v756 = vrot.slane %v749, %v755
    %v757 = vcombine.low %v732, %v740
    %v758 = vcombine.high %v732, %v740
    %v760 = vunpack.c.l.s4 1934713408
    %v761 = vunpack.c.0.s8 %v760
    %v762 = vlaneseq
    %v763 = vshrl.u32 %v762, 7
    %v764 = vsub.s32 %v761, %v763
    %v765 = vrot.slane %v757, %v764
    %v767 = vunpack.c.l.s4 1934713408
    %v768 = vunpack.c.0.s8 %v767
    %v769 = vlaneseq
    %v770 = vshrl.u32 %v769, 7
    %v771 = vsub.s32 %v768, %v770
    %v772 = vrot.slane %v758, %v771
    %v773 = vcombine.low %v748, %v756
    %v774 = vcombine.high %v748, %v756
    %v776 = vunpack.c.l.s4 1934713408
    %v777 = vunpack.c.0.s8 %v776
    %v778 = vlaneseq
    %v779 = vshrl.u32 %v778, 7
    %v780 = vsub.s32 %v777, %v779
    %v781 = vrot.slane %v773, %v780
    %v783 = vunpack.c.l.s4 1934713408
    %v784 = vunpack.c.0.s8 %v783
    %v785 = vlaneseq
    %v786 = vshrl.u32 %v785, 7
    %v787 = vsub.s32 %v784, %v786
    %v788 = vrot.slane %v774, %v787
    %v789 = vcombine.low %v765, %v781
    %v790 = vcombine.high %v765, %v781
    %v791 = vcombine.low %v772, %v788
    %v792 = vcombine.high %v772, %v788
    %v793 = vcombine.low %v697, %v704
    %v795 = vunpack.c.l.s4 1983009808
    %v796 = vunpack.c.0.s8 %v795
    %v797 = vlaneseq
    %v798 = vshrl.u32 %v797, 7
    %v799 = vsub.s32 %v796, %v798
    %v800 = vrot.slane %v793, %v799
    %v801 = vcombine.low %v721, %v722
    %v803 = vunpack.c.l.s4 1983009808
    %v804 = vunpack.c.0.s8 %v803
    %v805 = vlaneseq
    %v806 = vshrl.u32 %v805, 7
    %v807 = vsub.s32 %v804, %v806
    %v808 = vrot.slane %v801, %v807
    %v809 = vcombine.low %v713, %v720
    %v811 = vunpack.c.l.s4 1983009808
    %v812 = vunpack.c.0.s8 %v811
    %v813 = vlaneseq
    %v814 = vshrl.u32 %v813, 7
    %v815 = vsub.s32 %v812, %v814
    %v816 = vrot.slane %v809, %v815
    %v817 = vcombine.low %v723, %v724
    %v819 = vunpack.c.l.s4 1983009808
    %v820 = vunpack.c.0.s8 %v819
    %v821 = vlaneseq
    %v822 = vshrl.u32 %v821, 7
    %v823 = vsub.s32 %v820, %v822
    %v824 = vrot.slane %v817, %v823
    %v825 = vcombine.low %v800, %v808
    %v826 = vcombine.high %v800, %v808
    %v828 = vunpack.c.l.s4 1934713408
    %v829 = vunpack.c.0.s8 %v828
    %v830 = vlaneseq
    %v831 = vshrl.u32 %v830, 7
    %v832 = vsub.s32 %v829, %v831
    %v833 = vrot.slane %v825, %v832
    %v835 = vunpack.c.l.s4 1934713408
    %v836 = vunpack.c.0.s8 %v835
    %v837 = vlaneseq
    %v838 = vshrl.u32 %v837, 7
    %v839 = vsub.s32 %v836, %v838
    %v840 = vrot.slane %v826, %v839
    %v841 = vcombine.low %v816, %v824
    %v842 = vcombine.high %v816, %v824
    %v844 = vunpack.c.l.s4 1934713408
    %v845 = vunpack.c.0.s8 %v844
    %v846 = vlaneseq
    %v847 = vshrl.u32 %v846, 7
    %v848 = vsub.s32 %v845, %v847
    %v849 = vrot.slane %v841, %v848
    %v851 = vunpack.c.l.s4 1934713408
    %v852 = vunpack.c.0.s8 %v851
    %v853 = vlaneseq
    %v854 = vshrl.u32 %v853, 7
    %v855 = vsub.s32 %v852, %v854
    %v856 = vrot.slane %v842, %v855
    %v857 = vcombine.low %v833, %v849
    %v858 = vcombine.high %v833, %v849
    %v859 = vcombine.low %v840, %v856
    %v860 = vcombine.high %v840, %v856
    %861 = vst.msk [vmem:[#allocation8] sm:$0xff] %vm560, %v789
    %862 = vst.msk [vmem:[#allocation8 + $0x8] sm:$0xff] %vm560, %v857
    %863 = vst.msk [vmem:[#allocation8 + $0x10] sm:$0xff] %vm560, %v790
    %864 = vst.msk [vmem:[#allocation8 + $0x18] sm:$0xff] %vm560, %v858
    %865 = vst.msk [vmem:[#allocation8 + $0x20] sm:$0xff] %vm560, %v791
    %866 = vst.msk [vmem:[#allocation8 + $0x28] sm:$0xff] %vm560, %v859
    %867 = vst.msk [vmem:[#allocation8 + $0x30] sm:$0xff] %vm560, %v792
    %868 = vst.msk [vmem:[#allocation8 + $0x38] sm:$0xff] %vm560, %v860
    %871 = vrot.lane.b32.xlu0 %v258, 96
    %v872 = vpop.permute.xlu0 %871
    %873 = vrot.lane.b32.xlu0 %v263, 96
    %v874 = vpop.permute.xlu0 %873
    %877 = vrot.lane.b32.xlu0 %v258, 64
    %v878 = vpop.permute.xlu0 %877
    %879 = vrot.lane.b32.xlu0 %v263, 64
    %v880 = vpop.permute.xlu0 %879
    %883 = vrot.lane.b32.xlu0 %v258, 32
    %v884 = vpop.permute.xlu0 %883
    %885 = vrot.lane.b32.xlu0 %v263, 32
    %v886 = vpop.permute.xlu0 %885
    %v889 = vcombine.low %v258, %v878
    %v890 = vcombine.high %v258, %v878
    %v892 = vunpack.c.l.s4 1983009808
    %v893 = vunpack.c.0.s8 %v892
    %v894 = vlaneseq
    %v895 = vshrl.u32 %v894, 7
    %v896 = vsub.s32 %v893, %v895
    %v897 = vrot.slane %v889, %v896
    %v899 = vunpack.c.l.s4 1983009808
    %v900 = vunpack.c.0.s8 %v899
    %v901 = vlaneseq
    %v902 = vshrl.u32 %v901, 7
    %v903 = vsub.s32 %v900, %v902
    %v904 = vrot.slane %v890, %v903
    %v905 = vcombine.low %v872, %v884
    %v906 = vcombine.high %v872, %v884
    %v908 = vunpack.c.l.s4 1983009808
    %v909 = vunpack.c.0.s8 %v908
    %v910 = vlaneseq
    %v911 = vshrl.u32 %v910, 7
    %v912 = vsub.s32 %v909, %v911
    %v913 = vrot.slane %v905, %v912
    %v915 = vunpack.c.l.s4 1983009808
    %v916 = vunpack.c.0.s8 %v915
    %v917 = vlaneseq
    %v918 = vshrl.u32 %v917, 7
    %v919 = vsub.s32 %v916, %v918
    %v920 = vrot.slane %v906, %v919
    %v921 = vcombine.low %v897, %v913
    %v922 = vcombine.high %v897, %v913
    %v924 = vunpack.c.l.s4 1934713408
    %v925 = vunpack.c.0.s8 %v924
    %v926 = vlaneseq
    %v927 = vshrl.u32 %v926, 7
    %v928 = vsub.s32 %v925, %v927
    %v929 = vrot.slane %v921, %v928
    %v931 = vunpack.c.l.s4 1934713408
    %v932 = vunpack.c.0.s8 %v931
    %v933 = vlaneseq
    %v934 = vshrl.u32 %v933, 7
    %v935 = vsub.s32 %v932, %v934
    %v936 = vrot.slane %v922, %v935
    %v937 = vcombine.low %v904, %v920
    %v938 = vcombine.high %v904, %v920
    %v940 = vunpack.c.l.s4 1934713408
    %v941 = vunpack.c.0.s8 %v940
    %v942 = vlaneseq
    %v943 = vshrl.u32 %v942, 7
    %v944 = vsub.s32 %v941, %v943
    %v945 = vrot.slane %v937, %v944
    %v947 = vunpack.c.l.s4 1934713408
    %v948 = vunpack.c.0.s8 %v947
    %v949 = vlaneseq
    %v950 = vshrl.u32 %v949, 7
    %v951 = vsub.s32 %v948, %v950
    %v952 = vrot.slane %v938, %v951
    %v953 = vcombine.high %v929, 0.0
    %v954 = vcombine.high %v936, 0.0
    %v955 = vcombine.high %v945, 0.0
    %v956 = vcombine.high %v952, 0.0
    %v957 = vcombine.low %v263, %v880
    %v958 = vcombine.high %v263, %v880
    %v960 = vunpack.c.l.s4 1983009808
    %v961 = vunpack.c.0.s8 %v960
    %v962 = vlaneseq
    %v963 = vshrl.u32 %v962, 7
    %v964 = vsub.s32 %v961, %v963
    %v965 = vrot.slane %v957, %v964
    %v967 = vunpack.c.l.s4 1983009808
    %v968 = vunpack.c.0.s8 %v967
    %v969 = vlaneseq
    %v970 = vshrl.u32 %v969, 7
    %v971 = vsub.s32 %v968, %v970
    %v972 = vrot.slane %v958, %v971
    %v973 = vcombine.low %v874, %v886
    %v974 = vcombine.high %v874, %v886
    %v976 = vunpack.c.l.s4 1983009808
    %v977 = vunpack.c.0.s8 %v976
    %v978 = vlaneseq
    %v979 = vshrl.u32 %v978, 7
    %v980 = vsub.s32 %v977, %v979
    %v981 = vrot.slane %v973, %v980
    %v983 = vunpack.c.l.s4 1983009808
    %v984 = vunpack.c.0.s8 %v983
    %v985 = vlaneseq
    %v986 = vshrl.u32 %v985, 7
    %v987 = vsub.s32 %v984, %v986
    %v988 = vrot.slane %v974, %v987
    %v989 = vcombine.low %v965, %v981
    %v990 = vcombine.high %v965, %v981
    %v992 = vunpack.c.l.s4 1934713408
    %v993 = vunpack.c.0.s8 %v992
    %v994 = vlaneseq
    %v995 = vshrl.u32 %v994, 7
    %v996 = vsub.s32 %v993, %v995
    %v997 = vrot.slane %v989, %v996
    %v999 = vunpack.c.l.s4 1934713408
    %v1000 = vunpack.c.0.s8 %v999
    %v1001 = vlaneseq
    %v1002 = vshrl.u32 %v1001, 7
    %v1003 = vsub.s32 %v1000, %v1002
    %v1004 = vrot.slane %v990, %v1003
    %v1005 = vcombine.low %v972, %v988
    %v1006 = vcombine.high %v972, %v988
    %v1008 = vunpack.c.l.s4 1934713408
    %v1009 = vunpack.c.0.s8 %v1008
    %v1010 = vlaneseq
    %v1011 = vshrl.u32 %v1010, 7
    %v1012 = vsub.s32 %v1009, %v1011
    %v1013 = vrot.slane %v1005, %v1012
    %v1015 = vunpack.c.l.s4 1934713408
    %v1016 = vunpack.c.0.s8 %v1015
    %v1017 = vlaneseq
    %v1018 = vshrl.u32 %v1017, 7
    %v1019 = vsub.s32 %v1016, %v1018
    %v1020 = vrot.slane %v1006, %v1019
    %v1021 = vcombine.high %v997, 0.0
    %v1022 = vcombine.high %v1004, 0.0
    %v1023 = vcombine.high %v1013, 0.0
    %v1024 = vcombine.high %v1020, 0.0
    %v1025 = vcombine.low %v929, %v936
    %v1027 = vunpack.c.l.s4 1983009808
    %v1028 = vunpack.c.0.s8 %v1027
    %v1029 = vlaneseq
    %v1030 = vshrl.u32 %v1029, 7
    %v1031 = vsub.s32 %v1028, %v1030
    %v1032 = vrot.slane %v1025, %v1031
    %v1033 = vcombine.low %v953, %v954
    %v1035 = vunpack.c.l.s4 1983009808
    %v1036 = vunpack.c.0.s8 %v1035
    %v1037 = vlaneseq
    %v1038 = vshrl.u32 %v1037, 7
    %v1039 = vsub.s32 %v1036, %v1038
    %v1040 = vrot.slane %v1033, %v1039
    %v1041 = vcombine.low %v945, %v952
    %v1043 = vunpack.c.l.s4 1983009808
    %v1044 = vunpack.c.0.s8 %v1043
    %v1045 = vlaneseq
    %v1046 = vshrl.u32 %v1045, 7
    %v1047 = vsub.s32 %v1044, %v1046
    %v1048 = vrot.slane %v1041, %v1047
    %v1049 = vcombine.low %v955, %v956
    %v1051 = vunpack.c.l.s4 1983009808
    %v1052 = vunpack.c.0.s8 %v1051
    %v1053 = vlaneseq
    %v1054 = vshrl.u32 %v1053, 7
    %v1055 = vsub.s32 %v1052, %v1054
    %v1056 = vrot.slane %v1049, %v1055
    %v1057 = vcombine.low %v1032, %v1040
    %v1058 = vcombine.high %v1032, %v1040
    %v1060 = vunpack.c.l.s4 1934713408
    %v1061 = vunpack.c.0.s8 %v1060
    %v1062 = vlaneseq
    %v1063 = vshrl.u32 %v1062, 7
    %v1064 = vsub.s32 %v1061, %v1063
    %v1065 = vrot.slane %v1057, %v1064
    %v1067 = vunpack.c.l.s4 1934713408
    %v1068 = vunpack.c.0.s8 %v1067
    %v1069 = vlaneseq
    %v1070 = vshrl.u32 %v1069, 7
    %v1071 = vsub.s32 %v1068, %v1070
    %v1072 = vrot.slane %v1058, %v1071
    %v1073 = vcombine.low %v1048, %v1056
    %v1074 = vcombine.high %v1048, %v1056
    %v1076 = vunpack.c.l.s4 1934713408
    %v1077 = vunpack.c.0.s8 %v1076
    %v1078 = vlaneseq
    %v1079 = vshrl.u32 %v1078, 7
    %v1080 = vsub.s32 %v1077, %v1079
    %v1081 = vrot.slane %v1073, %v1080
    %v1083 = vunpack.c.l.s4 1934713408
    %v1084 = vunpack.c.0.s8 %v1083
    %v1085 = vlaneseq
    %v1086 = vshrl.u32 %v1085, 7
    %v1087 = vsub.s32 %v1084, %v1086
    %v1088 = vrot.slane %v1074, %v1087
    %v1089 = vcombine.low %v1065, %v1081
    %v1090 = vcombine.high %v1065, %v1081
    %v1091 = vcombine.low %v1072, %v1088
    %v1092 = vcombine.high %v1072, %v1088
    %v1093 = vcombine.low %v997, %v1004
    %v1095 = vunpack.c.l.s4 1983009808
    %v1096 = vunpack.c.0.s8 %v1095
    %v1097 = vlaneseq
    %v1098 = vshrl.u32 %v1097, 7
    %v1099 = vsub.s32 %v1096, %v1098
    %v1100 = vrot.slane %v1093, %v1099
    %v1101 = vcombine.low %v1021, %v1022
    %v1103 = vunpack.c.l.s4 1983009808
    %v1104 = vunpack.c.0.s8 %v1103
    %v1105 = vlaneseq
    %v1106 = vshrl.u32 %v1105, 7
    %v1107 = vsub.s32 %v1104, %v1106
    %v1108 = vrot.slane %v1101, %v1107
    %v1109 = vcombine.low %v1013, %v1020
    %v1111 = vunpack.c.l.s4 1983009808
    %v1112 = vunpack.c.0.s8 %v1111
    %v1113 = vlaneseq
    %v1114 = vshrl.u32 %v1113, 7
    %v1115 = vsub.s32 %v1112, %v1114
    %v1116 = vrot.slane %v1109, %v1115
    %v1117 = vcombine.low %v1023, %v1024
    %v1119 = vunpack.c.l.s4 1983009808
    %v1120 = vunpack.c.0.s8 %v1119
    %v1121 = vlaneseq
    %v1122 = vshrl.u32 %v1121, 7
    %v1123 = vsub.s32 %v1120, %v1122
    %v1124 = vrot.slane %v1117, %v1123
    %v1125 = vcombine.low %v1100, %v1108
    %v1126 = vcombine.high %v1100, %v1108
    %v1128 = vunpack.c.l.s4 1934713408
    %v1129 = vunpack.c.0.s8 %v1128
    %v1130 = vlaneseq
    %v1131 = vshrl.u32 %v1130, 7
    %v1132 = vsub.s32 %v1129, %v1131
    %v1133 = vrot.slane %v1125, %v1132
    %v1135 = vunpack.c.l.s4 1934713408
    %v1136 = vunpack.c.0.s8 %v1135
    %v1137 = vlaneseq
    %v1138 = vshrl.u32 %v1137, 7
    %v1139 = vsub.s32 %v1136, %v1138
    %v1140 = vrot.slane %v1126, %v1139
    %v1141 = vcombine.low %v1116, %v1124
    %v1142 = vcombine.high %v1116, %v1124
    %v1144 = vunpack.c.l.s4 1934713408
    %v1145 = vunpack.c.0.s8 %v1144
    %v1146 = vlaneseq
    %v1147 = vshrl.u32 %v1146, 7
    %v1148 = vsub.s32 %v1145, %v1147
    %v1149 = vrot.slane %v1141, %v1148
    %v1151 = vunpack.c.l.s4 1934713408
    %v1152 = vunpack.c.0.s8 %v1151
    %v1153 = vlaneseq
    %v1154 = vshrl.u32 %v1153, 7
    %v1155 = vsub.s32 %v1152, %v1154
    %v1156 = vrot.slane %v1142, %v1155
    %v1157 = vcombine.low %v1133, %v1149
    %v1158 = vcombine.high %v1133, %v1149
    %v1159 = vcombine.low %v1140, %v1156
    %v1160 = vcombine.high %v1140, %v1156
    %1161 = vst.msk [vmem:[#allocation10] sm:$0xff] %vm560, %v1089
    %1162 = vst.msk [vmem:[#allocation10 + $0x8] sm:$0xff] %vm560, %v1157
    %1163 = vst.msk [vmem:[#allocation10 + $0x10] sm:$0xff] %vm560, %v1090
    %1164 = vst.msk [vmem:[#allocation10 + $0x18] sm:$0xff] %vm560, %v1158
    %1165 = vst.msk [vmem:[#allocation10 + $0x20] sm:$0xff] %vm560, %v1091
    %1166 = vst.msk [vmem:[#allocation10 + $0x28] sm:$0xff] %vm560, %v1159
    %1167 = vst.msk [vmem:[#allocation10 + $0x30] sm:$0xff] %vm560, %v1092
    %1168 = vst.msk [vmem:[#allocation10 + $0x38] sm:$0xff] %vm560, %v1160
    // Predicated region
    $region22: #{tpu_custom_call.1} parent=1 // pred_check
      _
    $region23: #{tpu_custom_call.1} parent=1 // pred_check_branch
      %1170 = sbr.rel (0) target = $region25
    $region24: #{tpu_custom_call.1} parent=1 // pred_region
      %s1172 = ssub.s32 1024, 1024
      %1173 = vsyncadd [#allocation4], %s1172
      %s1174 = sshll.u32 [#allocation7], 4
      %s1175 = int_to_ptr.vmem [resolvable:$true] %s1174
      %1180 = dma.vmem_to_hbm [thread:$0]  %s1175, 1024, %s3, [#allocation4], 128, 128, 8
    $region25: #{tpu_custom_call.1} parent=1 // pred_fallthru
      _
    // Predicated region
    $region26: #{tpu_custom_call.1} parent=1 // pred_check
      _
    $region27: #{tpu_custom_call.1} parent=1 // pred_check_branch
      %1182 = sbr.rel (0) target = $region29
    $region28: #{tpu_custom_call.1} parent=1 // pred_region
      %s1184 = ssub.s32 1024, 1024
      %1185 = vsyncadd [#allocation9], %s1184
      %s1186 = sshll.u32 [#allocation8], 4
      %s1187 = int_to_ptr.vmem [resolvable:$true] %s1186
      %1192 = dma.vmem_to_hbm [thread:$0]  %s1187, 1024, %s4, [#allocation9], 128, 128, 8
    $region29: #{tpu_custom_call.1} parent=1 // pred_fallthru
      _
    // Predicated region
    $region30: #{tpu_custom_call.1} parent=1 // pred_check
      _
    $region31: #{tpu_custom_call.1} parent=1 // pred_check_branch
      %1194 = sbr.rel (0) target = $region33
    $region32: #{tpu_custom_call.1} parent=1 // pred_region
      %s1196 = ssub.s32 1024, 1024
      %1197 = vsyncadd [#allocation9], %s1196
      %s1198 = sshll.u32 [#allocation10], 4
      %s1199 = int_to_ptr.vmem [resolvable:$true] %s1198
      %1204 = dma.vmem_to_hbm [thread:$0]  %s1199, 1024, %s5, [#allocation9], 128, 128, 8
    $region33: #{tpu_custom_call.1} parent=1 // pred_fallthru
      _
    // Predicated region
    $region34: #{tpu_custom_call.1} parent=1 // pred_check
      _
    $region35: #{tpu_custom_call.1} parent=1 // pred_check_branch
      %1206 = sbr.rel (0) target = $region37
    $region36: #{tpu_custom_call.1} parent=1 // pred_region
      %1207 = dma.done [#allocation4], 1024
    $region37: #{tpu_custom_call.1} parent=1 // pred_fallthru
      _
    // Predicated region
    $region38: #{tpu_custom_call.1} parent=1 // pred_check
      _
    $region39: #{tpu_custom_call.1} parent=1 // pred_check_branch
      %1209 = sbr.rel (0) target = $region41
    $region40: #{tpu_custom_call.1} parent=1 // pred_region
      %1210 = dma.done [#allocation9], 1024
    $region41: #{tpu_custom_call.1} parent=1 // pred_fallthru
      _
    // Predicated region
    $region42: #{tpu_custom_call.1} parent=1 // pred_check
      _
    $region43: #{tpu_custom_call.1} parent=1 // pred_check_branch
      %1212 = sbr.rel (0) target = $region45
    $region44: #{tpu_custom_call.1} parent=1 // pred_region
      %1213 = dma.done [#allocation9], 1024
    $region45: #{tpu_custom_call.1} parent=1 // pred_fallthru
      _
    %1214 = vsyncpa [#allocation3], 1
    %1215 = vsyncpa [#allocation6], 1
    %1216 = vsyncpa [#allocation4], 1
    %1217 = vsyncpa [#allocation9], 1

</llo_original>
